<compile_context>
chip_gen: v7x
topology: tpu7x:2x2x1
jax: 0.10.0
libtpu: 0.0.40
codegen_flags: <defaults>
</compile_context>

<pallas_src>
import functools

import jax
import jax.numpy as jnp
from jax import lax
from jax.experimental import pallas as pl
from jax.experimental.pallas import tpu as pltpu


# ----------------------------------------------------------------------------
# Fused Pallas kernel: whole forward for one batch element per program.
# ----------------------------------------------------------------------------
def _fused_double_attn_kernel(
    x_ref,       # (1, S, C)     : [g ; h] along the query axis (compute dtype)
    mask_ref,    # (1, H, S, N)  : [mask_q ; mask_h] along the query axis (f32)
    wq_ref,      # (C, C)        : q weight (in, out)
    wkt_ref,     # (C, C)        : k weight, PRE-TRANSPOSED (out, in)
    wv_ref,      # (C, C)        : v weight (in, out)
    wp_ref,      # (C, C)        : output projection weight (in, out)
    pb_ref,      # (1, C)        : output projection bias (f32)
    h_out_ref,   # (1, N, C)
    g_out_ref,   # (1, M, C)
    ctx_ref,     # (S, C) f32 VMEM scratch: per-head context slab
    *, num_heads, head_dim, m_rows, scale, mxu_dtype):
    xb = x_ref[0]                      # (S, C)
    hb = xb[m_rows:, :]                # (N, C)  -- keys/values come from h only

    # ---- full-width projections (MXU-dense: C-wide outputs, C-deep K) -------
    q_all = jnp.dot(xb, wq_ref[...], preferred_element_type=jnp.float32) * scale
    kt_all = lax.dot_general(wkt_ref[...], hb, (((1,), (1,)), ((), ())),
                             preferred_element_type=jnp.float32)       # (C, N)
    v_all = jnp.dot(hb, wv_ref[...], preferred_element_type=jnp.float32)  # (N, C)

    q_all = q_all.astype(mxu_dtype)
    kt_all = kt_all.astype(mxu_dtype)
    v_all = v_all.astype(mxu_dtype)

    # ---- per-head attention (static lane/sublane slices, no transposes) -----
    # TODO(synk): for large H*Sq*Sk masks, move heads to an "arbitrary" grid
    # axis (mask blocks (1,1,S,N)) and for large N tile keys flash-style with
    # an online softmax; the demo shapes fit a single block comfortably.
    for hd in range(num_heads):
        lo = hd * head_dim
        q_h = q_all[:, lo:lo + head_dim]        # (S, Dh)
        kt_h = kt_all[lo:lo + head_dim, :]      # (Dh, N)
        v_h = v_all[:, lo:lo + head_dim]        # (N, Dh)

        s = jnp.dot(q_h, kt_h, preferred_element_type=jnp.float32)    # (S, N)
        s = s + mask_ref[0, hd]                                       # f32
        s = s - jnp.max(s, axis=-1, keepdims=True)
        p = jnp.exp(s)
        p = p * pl.reciprocal(jnp.sum(p, axis=-1, keepdims=True), approx=False)
        ctx_ref[:, lo:lo + head_dim] = jnp.dot(
            p.astype(mxu_dtype), v_h, preferred_element_type=jnp.float32)

    # ---- fused head-merge + output projection: ONE deep-K (S,C)@(C,C) -------
    out = jnp.dot(ctx_ref[...].astype(mxu_dtype), wp_ref[...],
                  preferred_element_type=jnp.float32) + pb_ref[...]   # (S, C)
    g_out_ref[0] = out[:m_rows, :].astype(g_out_ref.dtype)
    h_out_ref[0] = out[m_rows:, :].astype(h_out_ref.dtype)


# ----------------------------------------------------------------------------
# Module forward (single fused pallas_call)
# ----------------------------------------------------------------------------
def double_attention_forward(h, g, mask_q, mask_h, params, num_heads,
                             compute_dtype=jnp.bfloat16):
    B, N, C = h.shape
    M = g.shape[1]
    S = M + N
    Dh = C // num_heads
    scale = Dh ** (-0.5)

    # [g ; h] query stream -> one score/softmax/ctx dispatch per head.
    x = jnp.concatenate([g, h], axis=1).astype(compute_dtype)          # (B, S, C)

    # Masks stay f32 (softmax accuracy).  In this demo the masks are already
    # full (B, H, Sq, Sk) so no head-broadcast is materialized.
    # TODO(synk): for head-broadcast masks (B,1,Sq,Sk), add a head grid axis
    # and map the mask head index to 0 in its BlockSpec instead of broadcasting.
    mask_cat = jnp.concatenate(
        [jnp.broadcast_to(mask_q, (B, num_heads, M, N)),
         jnp.broadcast_to(mask_h, (B, num_heads, N, N))],
        axis=2).astype(jnp.float32)                                     # (B, H, S, N)

    # Weight prep (tiny one-time reshapes/transposes of weights; k is
    # pre-transposed so the kernel never transposes an activation).
    wq = params["q_w"].astype(compute_dtype)                            # (C, C)
    wk_t = params["kv_w"][:, :C].T.astype(compute_dtype)                # (C, C) (out, in)
    wv = params["kv_w"][:, C:].astype(compute_dtype)                    # (C, C)
    wp = params["proj_w"].astype(compute_dtype)                         # (C, C)
    pb = params["proj_b"].reshape(1, C).astype(jnp.float32)

    kernel = functools.partial(
        _fused_double_attn_kernel, num_heads=num_heads, head_dim=Dh,
        m_rows=M, scale=scale, mxu_dtype=compute_dtype)

    # Explicit VMEM budget: double-buffered in/out blocks + weights + scratch
    # (4 B/elem upper bound), clamped to [16 MiB, 64 MiB] so it fits v7x.
    block_bytes = (2 * S * C * 4                      # x (double-buffered)
                   + 2 * num_heads * S * N * 4        # mask
                   + 4 * C * C * 4 + 2 * C * 4        # weights + bias
                   + 2 * (N + M) * C * 4              # outputs
                   + S * C * 4)                       # ctx scratch
    vmem_limit = int(min(64 * 1024 * 1024,
                         max(2 * block_bytes, 16 * 1024 * 1024)))

    # TODO(synk): if B == 1 on v7x, add a "parallel" query-row tile axis so
    # both TensorCores get work; demo uses B=2.
    h_out, g_out = pl.pallas_call(
        kernel,
        out_shape=(jax.ShapeDtypeStruct((B, N, C), h.dtype),
                   jax.ShapeDtypeStruct((B, M, C), g.dtype)),
        grid=(B,),
        in_specs=[
            pl.BlockSpec((1, S, C), lambda b: (b, 0, 0)),
            pl.BlockSpec((1, num_heads, S, N), lambda b: (b, 0, 0, 0)),
            pl.BlockSpec((C, C), lambda b: (0, 0)),
            pl.BlockSpec((C, C), lambda b: (0, 0)),
            pl.BlockSpec((C, C), lambda b: (0, 0)),
            pl.BlockSpec((C, C), lambda b: (0, 0)),
            pl.BlockSpec((1, C), lambda b: (0, 0)),
        ],
        out_specs=(
            pl.BlockSpec((1, N, C), lambda b: (b, 0, 0)),
            pl.BlockSpec((1, M, C), lambda b: (b, 0, 0)),
        ),
        scratch_shapes=[pltpu.VMEM((S, C), jnp.float32)],
        compiler_params=pltpu.CompilerParams(
            dimension_semantics=("parallel",),        # megacore over batch
            vmem_limit_bytes=vmem_limit),
    )(x, mask_cat, wq, wk_t, wv, wp, pb)
    return h_out, g_out


# ----------------------------------------------------------------------------
# Pure-JAX reference (correctness check of the Pallas path)
# ----------------------------------------------------------------------------
def reference_forward(h, g, mask_q, mask_h, params, num_heads):
    B, N, C = h.shape
    M = g.shape[1]
    Dh = C // num_heads
    scale = Dh ** (-0.5)

    q_h = (h @ params["q_w"]).reshape(B, N, num_heads, Dh).transpose(0, 2, 1, 3)
    kv = (h @ params["kv_w"]).reshape(B, N, 2, num_heads, Dh).transpose(2, 0, 3, 1, 4)
    k_h, v_h = kv[0], kv[1]
    q_g = (g @ params["q_w"]).reshape(B, M, num_heads, Dh).transpose(0, 2, 1, 3)

    attn_g = jax.nn.softmax(q_g @ k_h.transpose(0, 1, 3, 2) * scale + mask_q, axis=-1)
    g_out = (attn_g @ v_h).transpose(0, 2, 1, 3).reshape(B, M, C)
    g_out = g_out @ params["proj_w"] + params["proj_b"].reshape(1, C)

    attn = jax.nn.softmax(q_h @ k_h.transpose(0, 1, 3, 2) * scale + mask_h, axis=-1)
    h_out = (attn @ v_h).transpose(0, 2, 1, 3).reshape(B, N, C)
    h_out = h_out @ params["proj_w"] + params["proj_b"].reshape(1, C)
    return h_out, g_out


# ----------------------------------------------------------------------------
# Main
# ----------------------------------------------------------------------------
if __name__ == "__main__":
    B, N, M = 2, 16, 8
    dim, num_heads = 32, 4

    key = jax.random.PRNGKey(0)
    ks = jax.random.split(key, 8)

    # Deterministic parameter init.  Weights stored as (in, out), i.e.
    # transposed relative to PyTorch's (out, in) layout.  qkv_bias=False.
    params = {
        "q_w": jax.random.normal(ks[0], (dim, dim), jnp.float32) * 0.05,
        "kv_w": jax.random.normal(ks[1], (dim, 2 * dim), jnp.float32) * 0.05,
        "proj_w": jax.random.normal(ks[2], (dim, dim), jnp.float32) * 0.05,
        "proj_b": jax.random.normal(ks[3], (dim,), jnp.float32) * 0.05,
    }

    h = jax.random.normal(ks[4], (B, N, dim), jnp.float32)
    g = jax.random.normal(ks[5], (B, M, dim), jnp.float32)
    mask_q = jax.random.normal(ks[6], (B, num_heads, M, N), jnp.float32) * 0.1
    mask_h = jax.random.normal(ks[7], (B, num_heads, N, N), jnp.float32) * 0.1

    h_ref, g_ref = reference_forward(h, g, mask_q, mask_h, params, num_heads)

    # Structural correctness: f32 MXU operands, tight tolerance.
    fwd_f32 = jax.jit(functools.partial(
        double_attention_forward, num_heads=num_heads, compute_dtype=jnp.float32))
    h32, g32 = fwd_f32(h, g, mask_q, mask_h, params)
    jax.block_until_ready((h32, g32))
    assert jnp.allclose(h32, h_ref, atol=1e-4, rtol=1e-4)
    assert jnp.allclose(g32, g_ref, atol=1e-4, rtol=1e-4)

    # Production fast path: bf16 MXU operands + f32 accumulation.  Tolerance
    # reflects bf16 operand quantization only (softmax math stays f32).
    fwd_bf16 = jax.jit(functools.partial(
        double_attention_forward, num_heads=num_heads, compute_dtype=jnp.bfloat16))
    h_out, g_out = fwd_bf16(h, g, mask_q, mask_h, params)
    jax.block_until_ready((h_out, g_out))
    assert jnp.allclose(h_out, h_ref, atol=2e-2, rtol=2e-2)
    assert jnp.allclose(g_out, g_ref, atol=2e-2, rtol=2e-2)

    print("KERNEL_OK")
</pallas_src>

<mosaic_0001>
module attributes {stable_mosaic.version = 11 : i64} {
  func.func @_fused_double_attn_kernel(%arg0: i32, %arg1: memref<1x24x32xf32, #tpu.memory_space<vmem>>, %arg2: memref<1x4x24x16xf32, #tpu.memory_space<vmem>>, %arg3: memref<32x32xf32, #tpu.memory_space<vmem>>, %arg4: memref<32x32xf32, #tpu.memory_space<vmem>>, %arg5: memref<32x32xf32, #tpu.memory_space<vmem>>, %arg6: memref<32x32xf32, #tpu.memory_space<vmem>>, %arg7: memref<1x32xf32, #tpu.memory_space<vmem>>, %arg8: memref<1x16x32xf32, #tpu.memory_space<vmem>>, %arg9: memref<1x8x32xf32, #tpu.memory_space<vmem>>, %arg10: memref<24x32xf32, #tpu.memory_space<vmem>>) attributes {dimension_semantics = [#tpu.dimension_semantics<parallel>], iteration_bounds = array<i64: 2>, scalar_prefetch = 0 : i64, scratch_operands = 1 : i64, tpu.core_type = #tpu.core_type<tc>, window_params = [{transform_indices = @transform_0, window_bounds = array<i64: 1, 24, 32>}, {transform_indices = @transform_1, window_bounds = array<i64: 1, 4, 24, 16>}, {pipeline_mode = #tpu.pipeline_mode<synchronous>, transform_indices = @transform_2, window_bounds = array<i64: 32, 32>}, {pipeline_mode = #tpu.pipeline_mode<synchronous>, transform_indices = @transform_3, window_bounds = array<i64: 32, 32>}, {pipeline_mode = #tpu.pipeline_mode<synchronous>, transform_indices = @transform_4, window_bounds = array<i64: 32, 32>}, {pipeline_mode = #tpu.pipeline_mode<synchronous>, transform_indices = @transform_5, window_bounds = array<i64: 32, 32>}, {pipeline_mode = #tpu.pipeline_mode<synchronous>, transform_indices = @transform_6, window_bounds = array<i64: 1, 32>}, {transform_indices = @transform_7, window_bounds = array<i64: 1, 16, 32>}, {transform_indices = @transform_8, window_bounds = array<i64: 1, 8, 32>}]} {
    %c0 = arith.constant 0 : index
    %c0_0 = arith.constant 0 : index
    %c0_1 = arith.constant 0 : index
    %0 = vector.load %arg1[%c0, %c0_0, %c0_1] : memref<1x24x32xf32, #tpu.memory_space<vmem>>, vector<1x24x32xf32>
    %1 = vector.shape_cast %0 : vector<1x24x32xf32> to vector<24x32xf32>
    %2 = vector.extract_strided_slice %1 {offsets = [8, 0], sizes = [16, 32], strides = [1, 1]} : vector<24x32xf32> to vector<16x32xf32>
    %c0_2 = arith.constant 0 : index
    %c0_3 = arith.constant 0 : index
    %3 = vector.load %arg3[%c0_2, %c0_3] : memref<32x32xf32, #tpu.memory_space<vmem>>, vector<32x32xf32>
    %cst = arith.constant dense<0.000000e+00> : vector<24x32xf32>
    %4 = tpu.matmul %1, %3, %cst {dimension_numbers = #tpu.dot_dimension_numbers<[1], [0], [0], [1], [0, 0, 1, 1], [], []>} : vector<24x32xf32>, vector<32x32xf32>, vector<24x32xf32> -> vector<24x32xf32>
    %cst_4 = arith.constant 0.353553385 : f32
    %5 = vector.broadcast %cst_4 : f32 to vector<24x32xf32>
    %6 = arith.mulf %4, %5 : vector<24x32xf32>
    %c0_5 = arith.constant 0 : index
    %c0_6 = arith.constant 0 : index
    %7 = vector.load %arg4[%c0_5, %c0_6] : memref<32x32xf32, #tpu.memory_space<vmem>>, vector<32x32xf32>
    %cst_7 = arith.constant dense<0.000000e+00> : vector<32x16xf32>
    %8 = tpu.matmul %7, %2, %cst_7 {dimension_numbers = #tpu.dot_dimension_numbers<[1], [1], [0], [0], [0, 0, 1, 0], [], []>} : vector<32x32xf32>, vector<16x32xf32>, vector<32x16xf32> -> vector<32x16xf32>
    %c0_8 = arith.constant 0 : index
    %c0_9 = arith.constant 0 : index
    %9 = vector.load %arg5[%c0_8, %c0_9] : memref<32x32xf32, #tpu.memory_space<vmem>>, vector<32x32xf32>
    %cst_10 = arith.constant dense<0.000000e+00> : vector<16x32xf32>
    %10 = tpu.matmul %2, %9, %cst_10 {dimension_numbers = #tpu.dot_dimension_numbers<[1], [0], [0], [1], [0, 0, 1, 1], [], []>} : vector<16x32xf32>, vector<32x32xf32>, vector<16x32xf32> -> vector<16x32xf32>
    %11 = vector.extract_strided_slice %6 {offsets = [0, 0], sizes = [24, 8], strides = [1, 1]} : vector<24x32xf32> to vector<24x8xf32>
    %12 = vector.extract_strided_slice %8 {offsets = [0, 0], sizes = [8, 16], strides = [1, 1]} : vector<32x16xf32> to vector<8x16xf32>
    %13 = vector.extract_strided_slice %10 {offsets = [0, 0], sizes = [16, 8], strides = [1, 1]} : vector<16x32xf32> to vector<16x8xf32>
    %cst_11 = arith.constant dense<0.000000e+00> : vector<24x16xf32>
    %14 = tpu.matmul %11, %12, %cst_11 {dimension_numbers = #tpu.dot_dimension_numbers<[1], [0], [0], [1], [0, 0, 1, 1], [], []>} : vector<24x8xf32>, vector<8x16xf32>, vector<24x16xf32> -> vector<24x16xf32>
    %c0_12 = arith.constant 0 : index
    %c0_13 = arith.constant 0 : index
    %c0_14 = arith.constant 0 : index
    %c0_15 = arith.constant 0 : index
    %15 = vector.load %arg2[%c0_12, %c0_13, %c0_14, %c0_15] : memref<1x4x24x16xf32, #tpu.memory_space<vmem>>, vector<1x1x24x16xf32>
    %16 = vector.shape_cast %15 : vector<1x1x24x16xf32> to vector<24x16xf32>
    %17 = arith.addf %14, %16 : vector<24x16xf32>
    %cst_16 = arith.constant dense<0xFF800000> : vector<24xf32>
    %18 = vector.multi_reduction <maximumf>, %17, %cst_16 [1] : vector<24x16xf32> to vector<24xf32>
    %19 = vector.shape_cast %18 : vector<24xf32> to vector<24x1xf32>
    %20 = vector.broadcast %19 : vector<24x1xf32> to vector<24x16xf32>
    %21 = arith.subf %17, %20 : vector<24x16xf32>
    %22 = math.exp %21 : vector<24x16xf32>
    %cst_17 = arith.constant dense<0.000000e+00> : vector<24xf32>
    %23 = vector.multi_reduction <add>, %22, %cst_17 [1] : vector<24x16xf32> to vector<24xf32>
    %24 = vector.shape_cast %23 : vector<24xf32> to vector<24x1xf32>
    %25 = tpu.reciprocal %24 : vector<24x1xf32> -> vector<24x1xf32>
    %26 = vector.broadcast %25 : vector<24x1xf32> to vector<24x16xf32>
    %27 = arith.mulf %22, %26 : vector<24x16xf32>
    %cst_18 = arith.constant dense<0.000000e+00> : vector<24x8xf32>
    %28 = tpu.matmul %27, %13, %cst_18 {dimension_numbers = #tpu.dot_dimension_numbers<[1], [0], [0], [1], [0, 0, 1, 1], [], []>} : vector<24x16xf32>, vector<16x8xf32>, vector<24x8xf32> -> vector<24x8xf32>
    %c0_19 = arith.constant 0 : index
    %c0_20 = arith.constant 0 : index
    %29 = vector.load %arg10[%c0_19, %c0_20] : memref<24x32xf32, #tpu.memory_space<vmem>>, vector<24x8xf32>
    tpu.vector_store %arg10[%c0_19, %c0_20], %28 {strides = array<i32>} : memref<24x32xf32, #tpu.memory_space<vmem>>, vector<24x8xf32>,
    %30 = vector.extract_strided_slice %6 {offsets = [0, 8], sizes = [24, 8], strides = [1, 1]} : vector<24x32xf32> to vector<24x8xf32>
    %31 = vector.extract_strided_slice %8 {offsets = [8, 0], sizes = [8, 16], strides = [1, 1]} : vector<32x16xf32> to vector<8x16xf32>
    %32 = vector.extract_strided_slice %10 {offsets = [0, 8], sizes = [16, 8], strides = [1, 1]} : vector<16x32xf32> to vector<16x8xf32>
    %cst_21 = arith.constant dense<0.000000e+00> : vector<24x16xf32>
    %33 = tpu.matmul %30, %31, %cst_21 {dimension_numbers = #tpu.dot_dimension_numbers<[1], [0], [0], [1], [0, 0, 1, 1], [], []>} : vector<24x8xf32>, vector<8x16xf32>, vector<24x16xf32> -> vector<24x16xf32>
    %c0_22 = arith.constant 0 : index
    %c1 = arith.constant 1 : index
    %c0_23 = arith.constant 0 : index
    %c0_24 = arith.constant 0 : index
    %34 = vector.load %arg2[%c0_22, %c1, %c0_23, %c0_24] : memref<1x4x24x16xf32, #tpu.memory_space<vmem>>, vector<1x1x24x16xf32>
    %35 = vector.shape_cast %34 : vector<1x1x24x16xf32> to vector<24x16xf32>
    %36 = arith.addf %33, %35 : vector<24x16xf32>
    %cst_25 = arith.constant dense<0xFF800000> : vector<24xf32>
    %37 = vector.multi_reduction <maximumf>, %36, %cst_25 [1] : vector<24x16xf32> to vector<24xf32>
    %38 = vector.shape_cast %37 : vector<24xf32> to vector<24x1xf32>
    %39 = vector.broadcast %38 : vector<24x1xf32> to vector<24x16xf32>
    %40 = arith.subf %36, %39 : vector<24x16xf32>
    %41 = math.exp %40 : vector<24x16xf32>
    %cst_26 = arith.constant dense<0.000000e+00> : vector<24xf32>
    %42 = vector.multi_reduction <add>, %41, %cst_26 [1] : vector<24x16xf32> to vector<24xf32>
    %43 = vector.shape_cast %42 : vector<24xf32> to vector<24x1xf32>
    %44 = tpu.reciprocal %43 : vector<24x1xf32> -> vector<24x1xf32>
    %45 = vector.broadcast %44 : vector<24x1xf32> to vector<24x16xf32>
    %46 = arith.mulf %41, %45 : vector<24x16xf32>
    %cst_27 = arith.constant dense<0.000000e+00> : vector<24x8xf32>
    %47 = tpu.matmul %46, %32, %cst_27 {dimension_numbers = #tpu.dot_dimension_numbers<[1], [0], [0], [1], [0, 0, 1, 1], [], []>} : vector<24x16xf32>, vector<16x8xf32>, vector<24x8xf32> -> vector<24x8xf32>
    %c0_28 = arith.constant 0 : index
    %c8 = arith.constant 8 : index
    %48 = vector.load %arg10[%c0_28, %c8] : memref<24x32xf32, #tpu.memory_space<vmem>>, vector<24x8xf32>
    tpu.vector_store %arg10[%c0_28, %c8], %47 {strides = array<i32>} : memref<24x32xf32, #tpu.memory_space<vmem>>, vector<24x8xf32>,
    %49 = vector.extract_strided_slice %6 {offsets = [0, 16], sizes = [24, 8], strides = [1, 1]} : vector<24x32xf32> to vector<24x8xf32>
    %50 = vector.extract_strided_slice %8 {offsets = [16, 0], sizes = [8, 16], strides = [1, 1]} : vector<32x16xf32> to vector<8x16xf32>
    %51 = vector.extract_strided_slice %10 {offsets = [0, 16], sizes = [16, 8], strides = [1, 1]} : vector<16x32xf32> to vector<16x8xf32>
    %cst_29 = arith.constant dense<0.000000e+00> : vector<24x16xf32>
    %52 = tpu.matmul %49, %50, %cst_29 {dimension_numbers = #tpu.dot_dimension_numbers<[1], [0], [0], [1], [0, 0, 1, 1], [], []>} : vector<24x8xf32>, vector<8x16xf32>, vector<24x16xf32> -> vector<24x16xf32>
    %c0_30 = arith.constant 0 : index
    %c2 = arith.constant 2 : index
    %c0_31 = arith.constant 0 : index
    %c0_32 = arith.constant 0 : index
    %53 = vector.load %arg2[%c0_30, %c2, %c0_31, %c0_32] : memref<1x4x24x16xf32, #tpu.memory_space<vmem>>, vector<1x1x24x16xf32>
    %54 = vector.shape_cast %53 : vector<1x1x24x16xf32> to vector<24x16xf32>
    %55 = arith.addf %52, %54 : vector<24x16xf32>
    %cst_33 = arith.constant dense<0xFF800000> : vector<24xf32>
    %56 = vector.multi_reduction <maximumf>, %55, %cst_33 [1] : vector<24x16xf32> to vector<24xf32>
    %57 = vector.shape_cast %56 : vector<24xf32> to vector<24x1xf32>
    %58 = vector.broadcast %57 : vector<24x1xf32> to vector<24x16xf32>
    %59 = arith.subf %55, %58 : vector<24x16xf32>
    %60 = math.exp %59 : vector<24x16xf32>
    %cst_34 = arith.constant dense<0.000000e+00> : vector<24xf32>
    %61 = vector.multi_reduction <add>, %60, %cst_34 [1] : vector<24x16xf32> to vector<24xf32>
    %62 = vector.shape_cast %61 : vector<24xf32> to vector<24x1xf32>
    %63 = tpu.reciprocal %62 : vector<24x1xf32> -> vector<24x1xf32>
    %64 = vector.broadcast %63 : vector<24x1xf32> to vector<24x16xf32>
    %65 = arith.mulf %60, %64 : vector<24x16xf32>
    %cst_35 = arith.constant dense<0.000000e+00> : vector<24x8xf32>
    %66 = tpu.matmul %65, %51, %cst_35 {dimension_numbers = #tpu.dot_dimension_numbers<[1], [0], [0], [1], [0, 0, 1, 1], [], []>} : vector<24x16xf32>, vector<16x8xf32>, vector<24x8xf32> -> vector<24x8xf32>
    %c0_36 = arith.constant 0 : index
    %c16 = arith.constant 16 : index
    %67 = vector.load %arg10[%c0_36, %c16] : memref<24x32xf32, #tpu.memory_space<vmem>>, vector<24x8xf32>
    tpu.vector_store %arg10[%c0_36, %c16], %66 {strides = array<i32>} : memref<24x32xf32, #tpu.memory_space<vmem>>, vector<24x8xf32>,
    %68 = vector.extract_strided_slice %6 {offsets = [0, 24], sizes = [24, 8], strides = [1, 1]} : vector<24x32xf32> to vector<24x8xf32>
    %69 = vector.extract_strided_slice %8 {offsets = [24, 0], sizes = [8, 16], strides = [1, 1]} : vector<32x16xf32> to vector<8x16xf32>
    %70 = vector.extract_strided_slice %10 {offsets = [0, 24], sizes = [16, 8], strides = [1, 1]} : vector<16x32xf32> to vector<16x8xf32>
    %cst_37 = arith.constant dense<0.000000e+00> : vector<24x16xf32>
    %71 = tpu.matmul %68, %69, %cst_37 {dimension_numbers = #tpu.dot_dimension_numbers<[1], [0], [0], [1], [0, 0, 1, 1], [], []>} : vector<24x8xf32>, vector<8x16xf32>, vector<24x16xf32> -> vector<24x16xf32>
    %c0_38 = arith.constant 0 : index
    %c3 = arith.constant 3 : index
    %c0_39 = arith.constant 0 : index
    %c0_40 = arith.constant 0 : index
    %72 = vector.load %arg2[%c0_38, %c3, %c0_39, %c0_40] : memref<1x4x24x16xf32, #tpu.memory_space<vmem>>, vector<1x1x24x16xf32>
    %73 = vector.shape_cast %72 : vector<1x1x24x16xf32> to vector<24x16xf32>
    %74 = arith.addf %71, %73 : vector<24x16xf32>
    %cst_41 = arith.constant dense<0xFF800000> : vector<24xf32>
    %75 = vector.multi_reduction <maximumf>, %74, %cst_41 [1] : vector<24x16xf32> to vector<24xf32>
    %76 = vector.shape_cast %75 : vector<24xf32> to vector<24x1xf32>
    %77 = vector.broadcast %76 : vector<24x1xf32> to vector<24x16xf32>
    %78 = arith.subf %74, %77 : vector<24x16xf32>
    %79 = math.exp %78 : vector<24x16xf32>
    %cst_42 = arith.constant dense<0.000000e+00> : vector<24xf32>
    %80 = vector.multi_reduction <add>, %79, %cst_42 [1] : vector<24x16xf32> to vector<24xf32>
    %81 = vector.shape_cast %80 : vector<24xf32> to vector<24x1xf32>
    %82 = tpu.reciprocal %81 : vector<24x1xf32> -> vector<24x1xf32>
    %83 = vector.broadcast %82 : vector<24x1xf32> to vector<24x16xf32>
    %84 = arith.mulf %79, %83 : vector<24x16xf32>
    %cst_43 = arith.constant dense<0.000000e+00> : vector<24x8xf32>
    %85 = tpu.matmul %84, %70, %cst_43 {dimension_numbers = #tpu.dot_dimension_numbers<[1], [0], [0], [1], [0, 0, 1, 1], [], []>} : vector<24x16xf32>, vector<16x8xf32>, vector<24x8xf32> -> vector<24x8xf32>
    %c0_44 = arith.constant 0 : index
    %c24 = arith.constant 24 : index
    %86 = vector.load %arg10[%c0_44, %c24] : memref<24x32xf32, #tpu.memory_space<vmem>>, vector<24x8xf32>
    tpu.vector_store %arg10[%c0_44, %c24], %85 {strides = array<i32>} : memref<24x32xf32, #tpu.memory_space<vmem>>, vector<24x8xf32>,
    %c0_45 = arith.constant 0 : index
    %c0_46 = arith.constant 0 : index
    %87 = vector.load %arg10[%c0_45, %c0_46] : memref<24x32xf32, #tpu.memory_space<vmem>>, vector<24x32xf32>
    %c0_47 = arith.constant 0 : index
    %c0_48 = arith.constant 0 : index
    %88 = vector.load %arg6[%c0_47, %c0_48] : memref<32x32xf32, #tpu.memory_space<vmem>>, vector<32x32xf32>
    %cst_49 = arith.constant dense<0.000000e+00> : vector<24x32xf32>
    %89 = tpu.matmul %87, %88, %cst_49 {dimension_numbers = #tpu.dot_dimension_numbers<[1], [0], [0], [1], [0, 0, 1, 1], [], []>} : vector<24x32xf32>, vector<32x32xf32>, vector<24x32xf32> -> vector<24x32xf32>
    %c0_50 = arith.constant 0 : index
    %c0_51 = arith.constant 0 : index
    %90 = vector.load %arg7[%c0_50, %c0_51] : memref<1x32xf32, #tpu.memory_space<vmem>>, vector<1x32xf32>
    %91 = vector.broadcast %90 : vector<1x32xf32> to vector<24x32xf32>
    %92 = arith.addf %89, %91 : vector<24x32xf32>
    %93 = vector.extract_strided_slice %92 {offsets = [0, 0], sizes = [8, 32], strides = [1, 1]} : vector<24x32xf32> to vector<8x32xf32>
    %c0_52 = arith.constant 0 : index
    %c0_53 = arith.constant 0 : index
    %c0_54 = arith.constant 0 : index
    %94 = vector.load %arg9[%c0_52, %c0_53, %c0_54] : memref<1x8x32xf32, #tpu.memory_space<vmem>>, vector<1x8x32xf32>
    %95 = vector.shape_cast %94 : vector<1x8x32xf32> to vector<8x32xf32>
    %96 = vector.shape_cast %93 : vector<8x32xf32> to vector<1x8x32xf32>
    tpu.vector_store %arg9[%c0_52, %c0_53, %c0_54], %96 {strides = array<i32>} : memref<1x8x32xf32, #tpu.memory_space<vmem>>, vector<1x8x32xf32>,
    %97 = vector.extract_strided_slice %92 {offsets = [8, 0], sizes = [16, 32], strides = [1, 1]} : vector<24x32xf32> to vector<16x32xf32>
    %c0_55 = arith.constant 0 : index
    %c0_56 = arith.constant 0 : index
    %c0_57 = arith.constant 0 : index
    %98 = vector.load %arg8[%c0_55, %c0_56, %c0_57] : memref<1x16x32xf32, #tpu.memory_space<vmem>>, vector<1x16x32xf32>
    %99 = vector.shape_cast %98 : vector<1x16x32xf32> to vector<16x32xf32>
    %100 = vector.shape_cast %97 : vector<16x32xf32> to vector<1x16x32xf32>
    tpu.vector_store %arg8[%c0_55, %c0_56, %c0_57], %100 {strides = array<i32>} : memref<1x16x32xf32, #tpu.memory_space<vmem>>, vector<1x16x32xf32>,
    return
  }
  func.func @transform_0(%arg0: i32) -> (i32, i32, i32) {
    %c0_i32 = arith.constant 0 : i32
    %c0_i32_0 = arith.constant 0 : i32
    %c0_i32_1 = arith.constant 0 : i32
    return %arg0, %c0_i32, %c0_i32_0 : i32, i32, i32
  }
  func.func @transform_1(%arg0: i32) -> (i32, i32, i32, i32) {
    %c0_i32 = arith.constant 0 : i32
    %c0_i32_0 = arith.constant 0 : i32
    %c0_i32_1 = arith.constant 0 : i32
    %c0_i32_2 = arith.constant 0 : i32
    return %arg0, %c0_i32, %c0_i32_0, %c0_i32_1 : i32, i32, i32, i32
  }
  func.func @transform_2(%arg0: i32) -> (i32, i32) {
    %c0_i32 = arith.constant 0 : i32
    %c0_i32_0 = arith.constant 0 : i32
    %c0_i32_1 = arith.constant 0 : i32
    return %c0_i32, %c0_i32_0 : i32, i32
  }
  func.func @transform_3(%arg0: i32) -> (i32, i32) {
    %c0_i32 = arith.constant 0 : i32
    %c0_i32_0 = arith.constant 0 : i32
    %c0_i32_1 = arith.constant 0 : i32
    return %c0_i32, %c0_i32_0 : i32, i32
  }
  func.func @transform_4(%arg0: i32) -> (i32, i32) {
    %c0_i32 = arith.constant 0 : i32
    %c0_i32_0 = arith.constant 0 : i32
    %c0_i32_1 = arith.constant 0 : i32
    return %c0_i32, %c0_i32_0 : i32, i32
  }
  func.func @transform_5(%arg0: i32) -> (i32, i32) {
    %c0_i32 = arith.constant 0 : i32
    %c0_i32_0 = arith.constant 0 : i32
    %c0_i32_1 = arith.constant 0 : i32
    return %c0_i32, %c0_i32_0 : i32, i32
  }
  func.func @transform_6(%arg0: i32) -> (i32, i32) {
    %c0_i32 = arith.constant 0 : i32
    %c0_i32_0 = arith.constant 0 : i32
    %c0_i32_1 = arith.constant 0 : i32
    return %c0_i32, %c0_i32_0 : i32, i32
  }
  func.func @transform_7(%arg0: i32) -> (i32, i32, i32) {
    %c0_i32 = arith.constant 0 : i32
    %c0_i32_0 = arith.constant 0 : i32
    %c0_i32_1 = arith.constant 0 : i32
    return %arg0, %c0_i32, %c0_i32_0 : i32, i32, i32
  }
  func.func @transform_8(%arg0: i32) -> (i32, i32, i32) {
    %c0_i32 = arith.constant 0 : i32
    %c0_i32_0 = arith.constant 0 : i32
    %c0_i32_1 = arith.constant 0 : i32
    return %arg0, %c0_i32, %c0_i32_0 : i32, i32, i32
  }
}

</mosaic_0001>

<llo_original>
// kernel: double_attention_forward.1
$region0: #{double_attention_forward.1}
  #allocation0 [shape = 'u32[]', space=smem, size = 0x4, offset = 0x4, fixed_abs, tag = 'smem constant byte address 0x4 - core index']
  #allocation1 [shape = 'u32[144,128]{1,0:T(1,128)}', space=vmem, size = 0x12000, scoped, tag = 'internal scratch']
  #allocation2 [shape = 'f32[24,32]{1,0:T(8,128)}', space=vmem, size = 0x3000, scoped, tag = 'scratch operand']
  %s0 = inlined_call_operand.vmem [shape: f32[2,24,32], index: 0, kind: input, shape index: {}]
  %s1 = inlined_call_operand.vmem [shape: f32[2,4,24,16], index: 1, kind: input, shape index: {}]
  %s2 = inlined_call_operand.vmem [shape: f32[32,32], index: 2, kind: input, shape index: {}]
  %s3 = inlined_call_operand.vmem [shape: f32[32,32], index: 3, kind: input, shape index: {}]
  %s4 = inlined_call_operand.vmem [shape: f32[32,32], index: 4, kind: input, shape index: {}]
  %s5 = inlined_call_operand.vmem [shape: f32[32,32], index: 5, kind: input, shape index: {}]
  %s6 = inlined_call_operand.vmem [shape: f32[1,32], index: 6, kind: input, shape index: {}]
  %s7 = inlined_call_operand.hbm [shape: f32[2,16,32], index: 7, kind: output, shape index: {0}]
  %s8 = inlined_call_operand.hbm [shape: f32[2,8,32], index: 8, kind: output, shape index: {1}]
  %9 = xla_tuple %s7, %s8
  %s10 = sld [smem:[#allocation0]]
  $region69: #{double_attention_forward.1} parent=0
    _
  %s12 = ssub.s32 1, %s10
  %s13 = scalar_select 0, %s12, %s10
  $region1: #{double_attention_forward.1} parent=0
    #allocation3 [shape = 'u8[16384]{0}', space=vmem, size = 0x4000, scoped, tag = 'output window, operand 0']
    #allocation4 [shape = 's32[2]{0}', space=sflag, size = 0x8, scoped, tag = 'scoped memory for double_attention_forward.1']
    #allocation5 [shape = 'u8[8192]{0}', space=vmem, size = 0x2000, scoped, tag = 'output window, operand 1']
    #allocation6 [shape = 's32[2]{0}', space=sflag, size = 0x8, scoped, tag = 'scoped memory for double_attention_forward.1']
    %14 = vsyncpa [#allocation4], 0
    %s15 = scalar_lea.sflag [#allocation4], 1
    %16 = vsyncpa %s15, 0
    %17 = vsyncpa [#allocation6], 0
    %s18 = scalar_lea.sflag [#allocation6], 1
    %19 = vsyncpa %s18, 0
    loop: start=0, step=1, limit=4
    $region2: #{double_attention_forward.1} parent=1 // loop_pre_header
      _
    $region3: #{double_attention_forward.1} parent=1 // loop_header
      %s21 = sphi 0, %s25
      %p22 = scmp.ge.s32.totalorder %s21, 4
      %s31 = sphi 0, %s33
      %s34 = sphi 0, %s31
      %s35 = sphi 0, %s34
      %s51 = sphi 0, %s35
      %s57 = sphi 0, %s59
      %s60 = sphi 0, %s57
      %s61 = sphi 0, %s60
      %s77 = sphi 0, %s61
      %s81 = sphi 0, %s81
      %s83 = sphi 0, %s81
      %s84 = sphi 0, %s83
      %s98 = sphi 0, %s84
      %s102 = sphi 0, %s102
      %s104 = sphi 0, %s102
      %s105 = sphi 0, %s104
      %s119 = sphi 0, %s105
      %s123 = sphi 0, %s123
      %s125 = sphi 0, %s123
      %s126 = sphi 0, %s125
      %s140 = sphi 0, %s126
      %s144 = sphi 0, %s144
      %s146 = sphi 0, %s144
      %s147 = sphi 0, %s146
      %s161 = sphi 0, %s147
      %s165 = sphi 0, %s165
      %s167 = sphi 0, %s165
      %s168 = sphi 0, %s167
      %s182 = sphi 0, %s168
      %s188 = sphi 0, %s190
      %s191 = sphi 0, %s188
      %s192 = sphi 0, %s191
      %s208 = sphi 0, %s192
      %s214 = sphi 0, %s216
      %s217 = sphi 0, %s214
      %s218 = sphi 0, %s217
      %s234 = sphi 0, %s218
    $region4: #{double_attention_forward.1} parent=1 // loop_header_branch
      %24 = sbr.rel (%p22) target = $region8
    $region5: #{double_attention_forward.1} parent=1 // loop_body
      %s26 = ssub.s32 %s21, 1
      %s27 = ssub.s32 %s21, 2
      %s28 = sadd.s32 %s21, 1
      %s29 = ssub.s32 %s21, %s28
      %p30 = scmp.eq.s32.totalorder %s29, 0
      %s32 = sadd.s32 %s31, 1
      %s33 = scalar_select %p30, %s31, %s32
      %p36 = pneg %p30
      %p37 = scmp.eq.s32.totalorder %s21, 1
      %p38 = por %p36, %p37
      %p39 = scmp.ne.s32.totalorder %s31, %s34
      %p40 = scmp.eq.s32.totalorder %s21, 0
      %p41 = por %p39, %p40
      %p42 = scmp.ne.s32.totalorder %s31, %s34
      %p43 = scmp.eq.s32.totalorder %s26, 1
      %p44 = por %p42, %p43
      %p45 = scmp.ne.s32.totalorder %s34, %s35
      %p46 = scmp.eq.s32.totalorder %s26, 0
      %p47 = por %p45, %p46
      %p48 = scmp.ne.s32.totalorder %s34, %s35
      %p49 = scmp.eq.s32.totalorder %s27, 1
      %p50 = por %p48, %p49
      %p52 = scmp.ne.s32.totalorder %s35, %s51
      %p53 = scmp.eq.s32.totalorder %s27, 0
      %p54 = por %p52, %p53
      %s55 = ssub.s32 %s21, %s28
      %p56 = scmp.eq.s32.totalorder %s55, 0
      %s58 = sadd.s32 %s57, 1
      %s59 = scalar_select %p56, %s57, %s58
      %p62 = pneg %p56
      %p63 = scmp.eq.s32.totalorder %s21, 1
      %p64 = por %p62, %p63
      %p65 = scmp.ne.s32.totalorder %s57, %s60
      %p66 = scmp.eq.s32.totalorder %s21, 0
      %p67 = por %p65, %p66
      %p68 = scmp.ne.s32.totalorder %s57, %s60
      %p69 = scmp.eq.s32.totalorder %s26, 1
      %p70 = por %p68, %p69
      %p71 = scmp.ne.s32.totalorder %s60, %s61
      %p72 = scmp.eq.s32.totalorder %s26, 0
      %p73 = por %p71, %p72
      %p74 = scmp.ne.s32.totalorder %s60, %s61
      %p75 = scmp.eq.s32.totalorder %s27, 1
      %p76 = por %p74, %p75
      %p78 = scmp.ne.s32.totalorder %s61, %s77
      %p79 = scmp.eq.s32.totalorder %s27, 0
      %p80 = por %p78, %p79
      %s82 = sadd.s32 %s81, 1
      %p85 = scmp.eq.s32.totalorder %s21, 1
      %p86 = scmp.ne.s32.totalorder %s81, %s83
      %p87 = scmp.eq.s32.totalorder %s21, 0
      %p88 = por %p86, %p87
      %p89 = scmp.ne.s32.totalorder %s81, %s83
      %p90 = scmp.eq.s32.totalorder %s26, 1
      %p91 = por %p89, %p90
      %p92 = scmp.ne.s32.totalorder %s83, %s84
      %p93 = scmp.eq.s32.totalorder %s26, 0
      %p94 = por %p92, %p93
      %p95 = scmp.ne.s32.totalorder %s83, %s84
      %p96 = scmp.eq.s32.totalorder %s27, 1
      %p97 = por %p95, %p96
      %p99 = scmp.ne.s32.totalorder %s84, %s98
      %p100 = scmp.eq.s32.totalorder %s27, 0
      %p101 = por %p99, %p100
      %s103 = sadd.s32 %s102, 1
      %p106 = scmp.eq.s32.totalorder %s21, 1
      %p107 = scmp.ne.s32.totalorder %s102, %s104
      %p108 = scmp.eq.s32.totalorder %s21, 0
      %p109 = por %p107, %p108
      %p110 = scmp.ne.s32.totalorder %s102, %s104
      %p111 = scmp.eq.s32.totalorder %s26, 1
      %p112 = por %p110, %p111
      %p113 = scmp.ne.s32.totalorder %s104, %s105
      %p114 = scmp.eq.s32.totalorder %s26, 0
      %p115 = por %p113, %p114
      %p116 = scmp.ne.s32.totalorder %s104, %s105
      %p117 = scmp.eq.s32.totalorder %s27, 1
      %p118 = por %p116, %p117
      %p120 = scmp.ne.s32.totalorder %s105, %s119
      %p121 = scmp.eq.s32.totalorder %s27, 0
      %p122 = por %p120, %p121
      %s124 = sadd.s32 %s123, 1
      %p127 = scmp.eq.s32.totalorder %s21, 1
      %p128 = scmp.ne.s32.totalorder %s123, %s125
      %p129 = scmp.eq.s32.totalorder %s21, 0
      %p130 = por %p128, %p129
      %p131 = scmp.ne.s32.totalorder %s123, %s125
      %p132 = scmp.eq.s32.totalorder %s26, 1
      %p133 = por %p131, %p132
      %p134 = scmp.ne.s32.totalorder %s125, %s126
      %p135 = scmp.eq.s32.totalorder %s26, 0
      %p136 = por %p134, %p135
      %p137 = scmp.ne.s32.totalorder %s125, %s126
      %p138 = scmp.eq.s32.totalorder %s27, 1
      %p139 = por %p137, %p138
      %p141 = scmp.ne.s32.totalorder %s126, %s140
      %p142 = scmp.eq.s32.totalorder %s27, 0
      %p143 = por %p141, %p142
      %s145 = sadd.s32 %s144, 1
      %p148 = scmp.eq.s32.totalorder %s21, 1
      %p149 = scmp.ne.s32.totalorder %s144, %s146
      %p150 = scmp.eq.s32.totalorder %s21, 0
      %p151 = por %p149, %p150
      %p152 = scmp.ne.s32.totalorder %s144, %s146
      %p153 = scmp.eq.s32.totalorder %s26, 1
      %p154 = por %p152, %p153
      %p155 = scmp.ne.s32.totalorder %s146, %s147
      %p156 = scmp.eq.s32.totalorder %s26, 0
      %p157 = por %p155, %p156
      %p158 = scmp.ne.s32.totalorder %s146, %s147
      %p159 = scmp.eq.s32.totalorder %s27, 1
      %p160 = por %p158, %p159
      %p162 = scmp.ne.s32.totalorder %s147, %s161
      %p163 = scmp.eq.s32.totalorder %s27, 0
      %p164 = por %p162, %p163
      %s166 = sadd.s32 %s165, 1
      %p169 = scmp.eq.s32.totalorder %s21, 1
      %p170 = scmp.ne.s32.totalorder %s165, %s167
      %p171 = scmp.eq.s32.totalorder %s21, 0
      %p172 = por %p170, %p171
      %p173 = scmp.ne.s32.totalorder %s165, %s167
      %p174 = scmp.eq.s32.totalorder %s26, 1
      %p175 = por %p173, %p174
      %p176 = scmp.ne.s32.totalorder %s167, %s168
      %p177 = scmp.eq.s32.totalorder %s26, 0
      %p178 = por %p176, %p177
      %p179 = scmp.ne.s32.totalorder %s167, %s168
      %p180 = scmp.eq.s32.totalorder %s27, 1
      %p181 = por %p179, %p180
      %p183 = scmp.ne.s32.totalorder %s168, %s182
      %p184 = scmp.eq.s32.totalorder %s27, 0
      %p185 = por %p183, %p184
      %s186 = ssub.s32 %s21, %s28
      %p187 = scmp.eq.s32.totalorder %s186, 0
      %s189 = sadd.s32 %s188, 1
      %s190 = scalar_select %p187, %s188, %s189
      %p193 = pneg %p187
      %p194 = scmp.eq.s32.totalorder %s21, 1
      %p195 = por %p193, %p194
      %p196 = scmp.ne.s32.totalorder %s188, %s191
      %p197 = scmp.eq.s32.totalorder %s21, 0
      %p198 = por %p196, %p197
      %p199 = scmp.ne.s32.totalorder %s188, %s191
      %p200 = scmp.eq.s32.totalorder %s26, 1
      %p201 = por %p199, %p200
      %p202 = scmp.ne.s32.totalorder %s191, %s192
      %p203 = scmp.eq.s32.totalorder %s26, 0
      %p204 = por %p202, %p203
      %p205 = scmp.ne.s32.totalorder %s191, %s192
      %p206 = scmp.eq.s32.totalorder %s27, 1
      %p207 = por %p205, %p206
      %p209 = scmp.ne.s32.totalorder %s192, %s208
      %p210 = scmp.eq.s32.totalorder %s27, 0
      %p211 = por %p209, %p210
      %s212 = ssub.s32 %s21, %s28
      %p213 = scmp.eq.s32.totalorder %s212, 0
      %s215 = sadd.s32 %s214, 1
      %s216 = scalar_select %p213, %s214, %s215
      %p219 = pneg %p213
      %p220 = scmp.eq.s32.totalorder %s21, 1
      %p221 = por %p219, %p220
      %p222 = scmp.ne.s32.totalorder %s214, %s217
      %p223 = scmp.eq.s32.totalorder %s21, 0
      %p224 = por %p222, %p223
      %p225 = scmp.ne.s32.totalorder %s214, %s217
      %p226 = scmp.eq.s32.totalorder %s26, 1
      %p227 = por %p225, %p226
      %p228 = scmp.ne.s32.totalorder %s217, %s218
      %p229 = scmp.eq.s32.totalorder %s26, 0
      %p230 = por %p228, %p229
      %p231 = scmp.ne.s32.totalorder %s217, %s218
      %p232 = scmp.eq.s32.totalorder %s27, 1
      %p233 = por %p231, %p232
      %p235 = scmp.ne.s32.totalorder %s218, %s234
      %p236 = scmp.eq.s32.totalorder %s27, 0
      %p237 = por %p235, %p236
      %p238 = scmp.le.s32.totalorder 1, %s21
      %p239 = scmp.lt.s32.totalorder %s21, 3
      %p240 = pnand %p238, %p239
      %p241 = pneg %p240
      // Predicated region
      $region9: #{double_attention_forward.1} parent=5 // pred_check
        _
      $region10: #{double_attention_forward.1} parent=5 // pred_check_branch
        %243 = sbr.rel (%p240) target = $region12
      $region11: #{double_attention_forward.1} parent=5 // pred_region
        %s244 = ssub.s32 %s21, 1
        // Predicated region
        $region13: #{double_attention_forward.1} parent=11 // pred_check
          %p245 = pneg %p94
        $region14: #{double_attention_forward.1} parent=11 // pred_check_branch
          %247 = sbr.rel (%p245) target = $region16
        $region15: #{double_attention_forward.1} parent=11 // pred_region
          _
        $region16: #{double_attention_forward.1} parent=11 // pred_fallthru
          _
        // Predicated region
        $region17: #{double_attention_forward.1} parent=11 // pred_check
          %p248 = pneg %p115
        $region18: #{double_attention_forward.1} parent=11 // pred_check_branch
          %250 = sbr.rel (%p248) target = $region20
        $region19: #{double_attention_forward.1} parent=11 // pred_region
          _
        $region20: #{double_attention_forward.1} parent=11 // pred_fallthru
          _
        // Predicated region
        $region21: #{double_attention_forward.1} parent=11 // pred_check
          %p251 = pneg %p136
        $region22: #{double_attention_forward.1} parent=11 // pred_check_branch
          %253 = sbr.rel (%p251) target = $region24
        $region23: #{double_attention_forward.1} parent=11 // pred_region
          _
        $region24: #{double_attention_forward.1} parent=11 // pred_fallthru
          _
        // Predicated region
        $region25: #{double_attention_forward.1} parent=11 // pred_check
          %p254 = pneg %p157
        $region26: #{double_attention_forward.1} parent=11 // pred_check_branch
          %256 = sbr.rel (%p254) target = $region28
        $region27: #{double_attention_forward.1} parent=11 // pred_region
          _
        $region28: #{double_attention_forward.1} parent=11 // pred_fallthru
          _
        // Predicated region
        $region29: #{double_attention_forward.1} parent=11 // pred_check
          %p257 = pneg %p178
        $region30: #{double_attention_forward.1} parent=11 // pred_check_branch
          %259 = sbr.rel (%p257) target = $region32
        $region31: #{double_attention_forward.1} parent=11 // pred_region
          _
        $region32: #{double_attention_forward.1} parent=11 // pred_fallthru
          _
      $region12: #{double_attention_forward.1} parent=5 // pred_fallthru
        _
      %p260 = scmp.lt.s32.totalorder %s21, 2
      // Predicated region
      $region33: #{double_attention_forward.1} parent=5 // pred_check
        %p261 = pneg %p260
      $region34: #{double_attention_forward.1} parent=5 // pred_check_branch
        %263 = sbr.rel (%p261) target = $region36
      $region35: #{double_attention_forward.1} parent=5 // pred_region
        // Predicated region
        $region37: #{double_attention_forward.1} parent=35 // pred_check
          %p264 = pneg %p41
        $region38: #{double_attention_forward.1} parent=35 // pred_check_branch
          %266 = sbr.rel (%p264) target = $region40
        $region39: #{double_attention_forward.1} parent=35 // pred_region
          %p267 = scmp.lt.s32.totalorder %s21, 1
          %s268 = scalar_select %p267, %s21, 1
          %s269 = smul.addr %s268, 3
          %s270 = smul.addr %s269, 8
          %s271 = scalar_lea.vmem %s0, %s270
        $region40: #{double_attention_forward.1} parent=35 // pred_fallthru
          _
        // Predicated region
        $region41: #{double_attention_forward.1} parent=35 // pred_check
          %p272 = pneg %p67
        $region42: #{double_attention_forward.1} parent=35 // pred_check_branch
          %274 = sbr.rel (%p272) target = $region44
        $region43: #{double_attention_forward.1} parent=35 // pred_region
          %p275 = scmp.lt.s32.totalorder %s21, 1
          %s276 = scalar_select %p275, %s21, 1
          %s277 = smul.addr %s276, 12
          %s278 = smul.addr %s277, 8
          %s279 = scalar_lea.vmem %s1, %s278
        $region44: #{double_attention_forward.1} parent=35 // pred_fallthru
          _
      $region36: #{double_attention_forward.1} parent=5 // pred_fallthru
        _
      %p280 = scmp.le.s32.totalorder 1, %s21
      %p281 = scmp.lt.s32.totalorder %s21, 3
      %p282 = pnand %p280, %p281
      %p283 = pneg %p282
      // Predicated region
      $region45: #{double_attention_forward.1} parent=5 // pred_check
        _
      $region46: #{double_attention_forward.1} parent=5 // pred_check_branch
        %285 = sbr.rel (%p282) target = $region48
      $region47: #{double_attention_forward.1} parent=5 // pred_region
        %s286 = ssub.s32 %s21, 1
        %p287 = scmp.lt.s32.totalorder %s26, 1
        %s288 = scalar_select %p287, %s26, 1
        %s289 = smul.addr %s288, 3
        %s290 = smul.addr %s289, 8
        %s291 = scalar_lea.vmem %s0, %s290
        %p292 = pneg %p47
        %p293 = pneg %p44
        %p294 = scmp.lt.s32.totalorder %s26, 1
        %s295 = scalar_select %p294, %s26, 1
        %s296 = smul.addr %s295, 12
        %s297 = smul.addr %s296, 8
        %s298 = scalar_lea.vmem %s1, %s297
        %p299 = pneg %p73
        %p300 = pneg %p70
        %p301 = pneg %p94
        %p302 = pneg %p91
        %p303 = pneg %p115
        %p304 = pneg %p112
        %p305 = pneg %p136
        %p306 = pneg %p133
        %p307 = pneg %p157
        %p308 = pneg %p154
        %p309 = pneg %p178
        %p310 = pneg %p175
        %p311 = pneg %p204
        %p312 = pneg %p201
        %s313 = sand.u32 %s191, 1
        %s314 = scalar_lea.sflag [#allocation4], %s313
        %s315 = sand.u32 %s191, 1
        %s316 = smul.addr %s315, 16
        %s317 = scalar_lea.vmem [#allocation3], %s316
        %p318 = pneg %p230
        %p319 = pneg %p227
        %s320 = sand.u32 %s217, 1
        %s321 = scalar_lea.sflag [#allocation6], %s320
        %s322 = sand.u32 %s217, 1
        %s323 = smul.addr %s322, 8
        %s324 = scalar_lea.vmem [#allocation5], %s323
        %p325 = scmp.lt.s32.totalorder %s26, 1
        %s326 = scalar_select %p325, %s26, 1
        %s327 = smul.addr %s326, 3
        %s328 = smul.addr %s327, 8
        %s329 = scalar_lea.vmem %s0, %s328
        %p330 = scmp.lt.s32.totalorder %s26, 1
        %s331 = scalar_select %p330, %s26, 1
        %s332 = smul.addr %s331, 12
        %s333 = smul.addr %s332, 8
        %s334 = scalar_lea.vmem %s1, %s333
        %v335 = vld [vmem:[%s329] sm:$0xff]
        %v336 = vld [vmem:[%s329 + $0x8] sm:$0xff]
        %v337 = vld [vmem:[%s329 + $0x10] sm:$0xff]
        %v338 = vld [vmem:[%s2] sm:$0xff]
        %v339 = vld [vmem:[%s2 + $0x8] sm:$0xff]
        %v340 = vld [vmem:[%s2 + $0x10] sm:$0xff]
        %v341 = vld [vmem:[%s2 + $0x18] sm:$0xff]
        %vm342 = vcmask 261120
        %v344 = vsel %vm342, %v335, 0
        %v347 = vsel %vm342, %v336, 0
        %v350 = vsel %vm342, %v337, 0
        %352 = vmatprep.subr.mxu0 0.0
        %353 = vmatpush1.msra.mxu0 %v338
        %354 = vmatprep.subr.mxu0 0.0
        %355 = vmatpush1.msra.mxu0 %v339
        %356 = vmatprep.subr.mxu0 0.0
        %357 = vmatpush1.msra.mxu0 %v340
        %358 = vmatprep.subr.mxu0 0.0
        %359 = vmatpush1.msra.mxu0 %v341
        %360 = vmatprep.subr.mxu0 0.0
        %361 = vmatpush1.msra.mxu0 0.0
        %362 = vmatprep.subr.mxu0 0.0
        %363 = vmatpush1.msra.mxu0 0.0
        %364 = vmatprep.subr.mxu0 0.0
        %365 = vmatpush1.msra.mxu0 0.0
        %366 = vmatprep.subr.mxu0 0.0
        %367 = vmatpush1.msra.mxu0 0.0
        %368 = vmatprep.subr.mxu0 0.0
        %369 = vmatpush1.msra.mxu0 0.0
        %370 = vmatprep.subr.mxu0 0.0
        %371 = vmatpush1.msra.mxu0 0.0
        %372 = vmatprep.subr.mxu0 0.0
        %373 = vmatpush1.msra.mxu0 0.0
        %374 = vmatprep.subr.mxu0 0.0
        %375 = vmatpush1.msra.mxu0 0.0
        %376 = vmatprep.subr.mxu0 0.0
        %377 = vmatpush1.msra.mxu0 0.0
        %378 = vmatprep.subr.mxu0 0.0
        %379 = vmatpush1.msra.mxu0 0.0
        %380 = vmatprep.subr.mxu0 0.0
        %381 = vmatpush1.msra.mxu0 0.0
        %382 = vmatprep.subr.mxu0 0.0
        %383 = vmatpush1.msra.mxu0 0.0
        %384 = vmatprep.subr.mxu0 0.0
        %385 = vmatpush1.msra.mxu0 0.0
        %386 = vmatprep.subr.mxu0 0.0
        %387 = vmatpush1.msra.mxu0 0.0
        %388 = vmatprep.subr.mxu0 0.0
        %389 = vmatpush1.msra.mxu0 0.0
        %390 = vmatprep.subr.mxu0 0.0
        %391 = vmatpush1.msra.mxu0 0.0
        %392 = vmatprep.subr.mxu0 0.0
        %393 = vmatpush1.msra.mxu0 0.0
        %394 = vmatprep.subr.mxu0 0.0
        %395 = vmatpush1.msra.mxu0 0.0
        %396 = vmatprep.subr.mxu0 0.0
        %397 = vmatpush1.msra.mxu0 0.0
        %398 = vmatprep.subr.mxu0 0.0
        %399 = vmatpush1.msra.mxu0 0.0
        %400 = vmatprep.subr.mxu0 0.0
        %401 = vmatpush1.msra.mxu0 0.0
        %402 = vmatprep.subr.mxu0 0.0
        %403 = vmatpush1.msra.mxu0 0.0
        %404 = vmatprep.subr.mxu0 0.0
        %405 = vmatpush1.msra.mxu0 0.0
        %406 = vmatprep.subr.mxu0 0.0
        %407 = vmatpush1.msra.mxu0 0.0
        %408 = vmatprep.subr.mxu0 0.0
        %409 = vmatpush1.msra.mxu0 0.0
        %410 = vmatprep.subr.mxu0 0.0
        %411 = vmatpush1.msra.mxu0 0.0
        %412 = vmatprep.subr.mxu0 0.0
        %413 = vmatpush1.msra.mxu0 0.0
        %414 = vmatprep.subr.mxu0 0.0
        %415 = vmatpush1.msra.mxu0 0.0
        %416 = vmatprep.mubr.f32.mxu0 0.0
        %417 = vmatmul.mubr.f32.gmra.mrb[0].mxu0 %v344
        %v418 = vpop.f32.mrb[0].mxu0
        %v419 = vadd.f32 0.0, %v418
        %v420 = vpop.f32.mrb[0].mxu0
        %421 = vmatprep.mubr.f32.mxu0 0.0
        %422 = vmatmul.mubr.f32.gmra.mrb[0].mxu0 %v347
        %v423 = vpop.f32.mrb[0].mxu0
        %v424 = vadd.f32 0.0, %v423
        %v425 = vpop.f32.mrb[0].mxu0
        %426 = vmatprep.mubr.f32.mxu0 0.0
        %427 = vmatmul.mubr.f32.gmra.mrb[0].mxu0 %v350
        %v428 = vpop.f32.mrb[0].mxu0
        %v429 = vadd.f32 0.0, %v428
        %v430 = vpop.f32.mrb[0].mxu0
        %431 = vdwg.mxu0
        %v432 = vmul.f32 %v419, 0.35355338
        %v433 = vmul.f32 %v424, 0.35355338
        %v434 = vmul.f32 %v429, 0.35355338
        %v435 = vld [vmem:[%s3] sm:$0xff]
        %v436 = vld [vmem:[%s3 + $0x8] sm:$0xff]
        %v437 = vld [vmem:[%s3 + $0x10] sm:$0xff]
        %v438 = vld [vmem:[%s3 + $0x18] sm:$0xff]
        %v440 = vsel %vm342, %v435, 0
        %v443 = vsel %vm342, %v436, 0
        %v446 = vsel %vm342, %v437, 0
        %v449 = vsel %vm342, %v438, 0
        %451 = vmatprep.subr.mxu0 0.0
        %452 = vmatpush1.xpose.msra.mxu0 %v347
        %453 = vmatprep.subr.mxu0 0.0
        %454 = vmatpush1.xpose.msra.mxu0 %v350
        %455 = vmatprep.subr.mxu0 0.0
        %456 = vmatpush1.xpose.msra.mxu0 0.0
        %457 = vmatprep.subr.mxu0 0.0
        %458 = vmatpush1.xpose.msra.mxu0 0.0
        %459 = vmatprep.subr.mxu0 0.0
        %460 = vmatpush1.xpose.msra.mxu0 0.0
        %461 = vmatprep.subr.mxu0 0.0
        %462 = vmatpush1.xpose.msra.mxu0 0.0
        %463 = vmatprep.subr.mxu0 0.0
        %464 = vmatpush1.xpose.msra.mxu0 0.0
        %465 = vmatprep.subr.mxu0 0.0
        %466 = vmatpush1.xpose.msra.mxu0 0.0
        %467 = vmatprep.subr.mxu0 0.0
        %468 = vmatpush1.xpose.msra.mxu0 0.0
        %469 = vmatprep.subr.mxu0 0.0
        %470 = vmatpush1.xpose.msra.mxu0 0.0
        %471 = vmatprep.subr.mxu0 0.0
        %472 = vmatpush1.xpose.msra.mxu0 0.0
        %473 = vmatprep.subr.mxu0 0.0
        %474 = vmatpush1.xpose.msra.mxu0 0.0
        %475 = vmatprep.subr.mxu0 0.0
        %476 = vmatpush1.xpose.msra.mxu0 0.0
        %477 = vmatprep.subr.mxu0 0.0
        %478 = vmatpush1.xpose.msra.mxu0 0.0
        %479 = vmatprep.subr.mxu0 0.0
        %480 = vmatpush1.xpose.msra.mxu0 0.0
        %481 = vmatprep.subr.mxu0 0.0
        %482 = vmatpush1.xpose.msra.mxu0 0.0
        %483 = vmatprep.subr.mxu0 0.0
        %484 = vmatpush1.xpose.msra.mxu0 0.0
        %485 = vmatprep.subr.mxu0 0.0
        %486 = vmatpush1.xpose.msra.mxu0 0.0
        %487 = vmatprep.subr.mxu0 0.0
        %488 = vmatpush1.xpose.msra.mxu0 0.0
        %489 = vmatprep.subr.mxu0 0.0
        %490 = vmatpush1.xpose.msra.mxu0 0.0
        %491 = vmatprep.subr.mxu0 0.0
        %492 = vmatpush1.xpose.msra.mxu0 0.0
        %493 = vmatprep.subr.mxu0 0.0
        %494 = vmatpush1.xpose.msra.mxu0 0.0
        %495 = vmatprep.subr.mxu0 0.0
        %496 = vmatpush1.xpose.msra.mxu0 0.0
        %497 = vmatprep.subr.mxu0 0.0
        %498 = vmatpush1.xpose.msra.mxu0 0.0
        %499 = vmatprep.subr.mxu0 0.0
        %500 = vmatpush1.xpose.msra.mxu0 0.0
        %501 = vmatprep.subr.mxu0 0.0
        %502 = vmatpush1.xpose.msra.mxu0 0.0
        %503 = vmatprep.subr.mxu0 0.0
        %504 = vmatpush1.xpose.msra.mxu0 0.0
        %505 = vmatprep.subr.mxu0 0.0
        %506 = vmatpush1.xpose.msra.mxu0 0.0
        %507 = vmatprep.subr.mxu0 0.0
        %508 = vmatpush1.xpose.msra.mxu0 0.0
        %509 = vmatprep.subr.mxu0 0.0
        %510 = vmatpush1.xpose.msra.mxu0 0.0
        %511 = vmatprep.subr.mxu0 0.0
        %512 = vmatpush1.xpose.msra.mxu0 0.0
        %513 = vmatprep.subr.mxu0 0.0
        %514 = vmatpush1.xpose.msra.mxu0 0.0
        %515 = vmatprep.mubr.f32.mxu0 0.0
        %516 = vmatmul.mubr.f32.gmra.mrb[0].mxu0 %v440
        %v517 = vpop.f32.mrb[0].mxu0
        %v518 = vadd.f32 0.0, %v517
        %v519 = vpop.f32.mrb[0].mxu0
        %520 = vmatprep.mubr.f32.mxu0 0.0
        %521 = vmatmul.mubr.f32.gmra.mrb[0].mxu0 %v443
        %v522 = vpop.f32.mrb[0].mxu0
        %v523 = vadd.f32 0.0, %v522
        %v524 = vpop.f32.mrb[0].mxu0
        %525 = vmatprep.mubr.f32.mxu0 0.0
        %526 = vmatmul.mubr.f32.gmra.mrb[0].mxu0 %v446
        %v527 = vpop.f32.mrb[0].mxu0
        %v528 = vadd.f32 0.0, %v527
        %v529 = vpop.f32.mrb[0].mxu0
        %530 = vmatprep.mubr.f32.mxu0 0.0
        %531 = vmatmul.mubr.f32.gmra.mrb[0].mxu0 %v449
        %v532 = vpop.f32.mrb[0].mxu0
        %v533 = vadd.f32 0.0, %v532
        %v534 = vpop.f32.mrb[0].mxu0
        %535 = vdwg.mxu0
        %v536 = vld [vmem:[%s4] sm:$0xff]
        %v537 = vld [vmem:[%s4 + $0x8] sm:$0xff]
        %v538 = vld [vmem:[%s4 + $0x10] sm:$0xff]
        %v539 = vld [vmem:[%s4 + $0x18] sm:$0xff]
        %540 = vmatprep.subr.mxu0 0.0
        %541 = vmatpush1.msra.mxu0 %v536
        %542 = vmatprep.subr.mxu0 0.0
        %543 = vmatpush1.msra.mxu0 %v537
        %544 = vmatprep.subr.mxu0 0.0
        %545 = vmatpush1.msra.mxu0 %v538
        %546 = vmatprep.subr.mxu0 0.0
        %547 = vmatpush1.msra.mxu0 %v539
        %548 = vmatprep.subr.mxu0 0.0
        %549 = vmatpush1.msra.mxu0 0.0
        %550 = vmatprep.subr.mxu0 0.0
        %551 = vmatpush1.msra.mxu0 0.0
        %552 = vmatprep.subr.mxu0 0.0
        %553 = vmatpush1.msra.mxu0 0.0
        %554 = vmatprep.subr.mxu0 0.0
        %555 = vmatpush1.msra.mxu0 0.0
        %556 = vmatprep.subr.mxu0 0.0
        %557 = vmatpush1.msra.mxu0 0.0
        %558 = vmatprep.subr.mxu0 0.0
        %559 = vmatpush1.msra.mxu0 0.0
        %560 = vmatprep.subr.mxu0 0.0
        %561 = vmatpush1.msra.mxu0 0.0
        %562 = vmatprep.subr.mxu0 0.0
        %563 = vmatpush1.msra.mxu0 0.0
        %564 = vmatprep.subr.mxu0 0.0
        %565 = vmatpush1.msra.mxu0 0.0
        %566 = vmatprep.subr.mxu0 0.0
        %567 = vmatpush1.msra.mxu0 0.0
        %568 = vmatprep.subr.mxu0 0.0
        %569 = vmatpush1.msra.mxu0 0.0
        %570 = vmatprep.subr.mxu0 0.0
        %571 = vmatpush1.msra.mxu0 0.0
        %572 = vmatprep.subr.mxu0 0.0
        %573 = vmatpush1.msra.mxu0 0.0
        %574 = vmatprep.subr.mxu0 0.0
        %575 = vmatpush1.msra.mxu0 0.0
        %576 = vmatprep.subr.mxu0 0.0
        %577 = vmatpush1.msra.mxu0 0.0
        %578 = vmatprep.subr.mxu0 0.0
        %579 = vmatpush1.msra.mxu0 0.0
        %580 = vmatprep.subr.mxu0 0.0
        %581 = vmatpush1.msra.mxu0 0.0
        %582 = vmatprep.subr.mxu0 0.0
        %583 = vmatpush1.msra.mxu0 0.0
        %584 = vmatprep.subr.mxu0 0.0
        %585 = vmatpush1.msra.mxu0 0.0
        %586 = vmatprep.subr.mxu0 0.0
        %587 = vmatpush1.msra.mxu0 0.0
        %588 = vmatprep.subr.mxu0 0.0
        %589 = vmatpush1.msra.mxu0 0.0
        %590 = vmatprep.subr.mxu0 0.0
        %591 = vmatpush1.msra.mxu0 0.0
        %592 = vmatprep.subr.mxu0 0.0
        %593 = vmatpush1.msra.mxu0 0.0
        %594 = vmatprep.subr.mxu0 0.0
        %595 = vmatpush1.msra.mxu0 0.0
        %596 = vmatprep.subr.mxu0 0.0
        %597 = vmatpush1.msra.mxu0 0.0
        %598 = vmatprep.subr.mxu0 0.0
        %599 = vmatpush1.msra.mxu0 0.0
        %600 = vmatprep.subr.mxu0 0.0
        %601 = vmatpush1.msra.mxu0 0.0
        %602 = vmatprep.subr.mxu0 0.0
        %603 = vmatpush1.msra.mxu0 0.0
        %604 = vmatprep.mubr.f32.mxu0 0.0
        %605 = vmatmul.mubr.f32.gmra.mrb[0].mxu0 %v347
        %v606 = vpop.f32.mrb[0].mxu0
        %v607 = vadd.f32 0.0, %v606
        %v608 = vpop.f32.mrb[0].mxu0
        %609 = vmatprep.mubr.f32.mxu0 0.0
        %610 = vmatmul.mubr.f32.gmra.mrb[0].mxu0 %v350
        %v611 = vpop.f32.mrb[0].mxu0
        %v612 = vadd.f32 0.0, %v611
        %v613 = vpop.f32.mrb[0].mxu0
        %614 = vdwg.mxu0
        %v615 = vld [vmem:[%s334] sm:$0xff]
        %v616 = vld [vmem:[%s334 + $0x8] sm:$0xff]
        %v617 = vld [vmem:[%s334 + $0x10] sm:$0xff]
        %vm618 = vcmask 64512
        %v620 = vsel %vm618, %v432, 0
        %v623 = vsel %vm618, %v433, 0
        %v626 = vsel %vm618, %v434, 0
        %628 = vmatprep.subr.mxu0 0.0
        %629 = vmatpush1.msra.mxu0 %v518
        %630 = vmatprep.subr.mxu0 0.0
        %631 = vmatpush1.msra.mxu0 0.0
        %632 = vmatprep.subr.mxu0 0.0
        %633 = vmatpush1.msra.mxu0 0.0
        %634 = vmatprep.subr.mxu0 0.0
        %635 = vmatpush1.msra.mxu0 0.0
        %636 = vmatprep.subr.mxu0 0.0
        %637 = vmatpush1.msra.mxu0 0.0
        %638 = vmatprep.subr.mxu0 0.0
        %639 = vmatpush1.msra.mxu0 0.0
        %640 = vmatprep.subr.mxu0 0.0
        %641 = vmatpush1.msra.mxu0 0.0
        %642 = vmatprep.subr.mxu0 0.0
        %643 = vmatpush1.msra.mxu0 0.0
        %644 = vmatprep.subr.mxu0 0.0
        %645 = vmatpush1.msra.mxu0 0.0
        %646 = vmatprep.subr.mxu0 0.0
        %647 = vmatpush1.msra.mxu0 0.0
        %648 = vmatprep.subr.mxu0 0.0
        %649 = vmatpush1.msra.mxu0 0.0
        %650 = vmatprep.subr.mxu0 0.0
        %651 = vmatpush1.msra.mxu0 0.0
        %652 = vmatprep.subr.mxu0 0.0
        %653 = vmatpush1.msra.mxu0 0.0
        %654 = vmatprep.subr.mxu0 0.0
        %655 = vmatpush1.msra.mxu0 0.0
        %656 = vmatprep.subr.mxu0 0.0
        %657 = vmatpush1.msra.mxu0 0.0
        %658 = vmatprep.subr.mxu0 0.0
        %659 = vmatpush1.msra.mxu0 0.0
        %660 = vmatprep.subr.mxu0 0.0
        %661 = vmatpush1.msra.mxu0 0.0
        %662 = vmatprep.subr.mxu0 0.0
        %663 = vmatpush1.msra.mxu0 0.0
        %664 = vmatprep.subr.mxu0 0.0
        %665 = vmatpush1.msra.mxu0 0.0
        %666 = vmatprep.subr.mxu0 0.0
        %667 = vmatpush1.msra.mxu0 0.0
        %668 = vmatprep.subr.mxu0 0.0
        %669 = vmatpush1.msra.mxu0 0.0
        %670 = vmatprep.subr.mxu0 0.0
        %671 = vmatpush1.msra.mxu0 0.0
        %672 = vmatprep.subr.mxu0 0.0
        %673 = vmatpush1.msra.mxu0 0.0
        %674 = vmatprep.subr.mxu0 0.0
        %675 = vmatpush1.msra.mxu0 0.0
        %676 = vmatprep.subr.mxu0 0.0
        %677 = vmatpush1.msra.mxu0 0.0
        %678 = vmatprep.subr.mxu0 0.0
        %679 = vmatpush1.msra.mxu0 0.0
        %680 = vmatprep.subr.mxu0 0.0
        %681 = vmatpush1.msra.mxu0 0.0
        %682 = vmatprep.subr.mxu0 0.0
        %683 = vmatpush1.msra.mxu0 0.0
        %684 = vmatprep.subr.mxu0 0.0
        %685 = vmatpush1.msra.mxu0 0.0
        %686 = vmatprep.subr.mxu0 0.0
        %687 = vmatpush1.msra.mxu0 0.0
        %688 = vmatprep.subr.mxu0 0.0
        %689 = vmatpush1.msra.mxu0 0.0
        %690 = vmatprep.subr.mxu0 0.0
        %691 = vmatpush1.msra.mxu0 0.0
        %692 = vmatprep.mubr.f32.mxu0 0.0
        %693 = vmatmul.mubr.f32.gmra.mrb[0].mxu0 %v620
        %v694 = vpop.f32.mrb[0].mxu0
        %v695 = vadd.f32 %v615, %v694
        %v696 = vpop.f32.mrb[0].mxu0
        %697 = vmatprep.mubr.f32.mxu0 0.0
        %698 = vmatmul.mubr.f32.gmra.mrb[0].mxu0 %v623
        %v699 = vpop.f32.mrb[0].mxu0
        %v700 = vadd.f32 %v616, %v699
        %v701 = vpop.f32.mrb[0].mxu0
        %702 = vmatprep.mubr.f32.mxu0 0.0
        %703 = vmatmul.mubr.f32.gmra.mrb[0].mxu0 %v626
        %v704 = vpop.f32.mrb[0].mxu0
        %v705 = vadd.f32 %v617, %v704
        %v706 = vpop.f32.mrb[0].mxu0
        %707 = vdwg.mxu0
        %vm708 = vcmask 130048
        %v709 = vsel %vm708, %v695, -inf
        %710 = vmax.xlane.f32.xlu0 %v709
        %v711 = vpop.xlane.xlu0 %710
        %v712 = vsel %vm708, %v700, -inf
        %713 = vmax.xlane.f32.xlu0 %v712
        %v714 = vpop.xlane.xlu0 %713
        %v715 = vsel %vm708, %v705, -inf
        %716 = vmax.xlane.f32.xlu0 %v715
        %v717 = vpop.xlane.xlu0 %716
        %v718 = vsub.f32 %v695, %v711
        %v719 = vsub.f32 %v700, %v714
        %v720 = vsub.f32 %v705, %v717
        %v721 = vmul.f32 %v718, 1.442695
        %v722 = vpow.pop %v721
        %v723 = vmul.f32 %v719, 1.442695
        %v724 = vpow.pop %v723
        %v725 = vmul.f32 %v720, 1.442695
        %v726 = vpow.pop %v725
        %v727 = vsel %vm708, %v722, 0.0
        %728 = vadd.xlane.f32.xlu0 %v727
        %v729 = vpop.xlane.xlu0 %728
        %v730 = vsel %vm708, %v724, 0.0
        %731 = vadd.xlane.f32.xlu0 %v730
        %v732 = vpop.xlane.xlu0 %731
        %v733 = vsel %vm708, %v726, 0.0
        %734 = vadd.xlane.f32.xlu0 %v733
        %v735 = vpop.xlane.xlu0 %734
        %v736 = vrcp.pop %v729
        %v737 = vrcp.pop %v732
        %v738 = vrcp.pop %v735
        %v739 = vmul.f32 %v722, %v736
        %v740 = vmul.f32 %v724, %v737
        %v741 = vmul.f32 %v726, %v738
        %v743 = vsel %vm708, %v739, 0
        %v746 = vsel %vm708, %v740, 0
        %v749 = vsel %vm708, %v741, 0
        %751 = vmatprep.subr.mxu0 0.0
        %752 = vmatpush1.msra.mxu0 %v607
        %753 = vmatprep.subr.mxu0 0.0
        %754 = vmatpush1.msra.mxu0 %v612
        %755 = vmatprep.subr.mxu0 0.0
        %756 = vmatpush1.msra.mxu0 0.0
        %757 = vmatprep.subr.mxu0 0.0
        %758 = vmatpush1.msra.mxu0 0.0
        %759 = vmatprep.subr.mxu0 0.0
        %760 = vmatpush1.msra.mxu0 0.0
        %761 = vmatprep.subr.mxu0 0.0
        %762 = vmatpush1.msra.mxu0 0.0
        %763 = vmatprep.subr.mxu0 0.0
        %764 = vmatpush1.msra.mxu0 0.0
        %765 = vmatprep.subr.mxu0 0.0
        %766 = vmatpush1.msra.mxu0 0.0
        %767 = vmatprep.subr.mxu0 0.0
        %768 = vmatpush1.msra.mxu0 0.0
        %769 = vmatprep.subr.mxu0 0.0
        %770 = vmatpush1.msra.mxu0 0.0
        %771 = vmatprep.subr.mxu0 0.0
        %772 = vmatpush1.msra.mxu0 0.0
        %773 = vmatprep.subr.mxu0 0.0
        %774 = vmatpush1.msra.mxu0 0.0
        %775 = vmatprep.subr.mxu0 0.0
        %776 = vmatpush1.msra.mxu0 0.0
        %777 = vmatprep.subr.mxu0 0.0
        %778 = vmatpush1.msra.mxu0 0.0
        %779 = vmatprep.subr.mxu0 0.0
        %780 = vmatpush1.msra.mxu0 0.0
        %781 = vmatprep.subr.mxu0 0.0
        %782 = vmatpush1.msra.mxu0 0.0
        %783 = vmatprep.subr.mxu0 0.0
        %784 = vmatpush1.msra.mxu0 0.0
        %785 = vmatprep.subr.mxu0 0.0
        %786 = vmatpush1.msra.mxu0 0.0
        %787 = vmatprep.subr.mxu0 0.0
        %788 = vmatpush1.msra.mxu0 0.0
        %789 = vmatprep.subr.mxu0 0.0
        %790 = vmatpush1.msra.mxu0 0.0
        %791 = vmatprep.subr.mxu0 0.0
        %792 = vmatpush1.msra.mxu0 0.0
        %793 = vmatprep.subr.mxu0 0.0
        %794 = vmatpush1.msra.mxu0 0.0
        %795 = vmatprep.subr.mxu0 0.0
        %796 = vmatpush1.msra.mxu0 0.0
        %797 = vmatprep.subr.mxu0 0.0
        %798 = vmatpush1.msra.mxu0 0.0
        %799 = vmatprep.subr.mxu0 0.0
        %800 = vmatpush1.msra.mxu0 0.0
        %801 = vmatprep.subr.mxu0 0.0
        %802 = vmatpush1.msra.mxu0 0.0
        %803 = vmatprep.subr.mxu0 0.0
        %804 = vmatpush1.msra.mxu0 0.0
        %805 = vmatprep.subr.mxu0 0.0
        %806 = vmatpush1.msra.mxu0 0.0
        %807 = vmatprep.subr.mxu0 0.0
        %808 = vmatpush1.msra.mxu0 0.0
        %809 = vmatprep.subr.mxu0 0.0
        %810 = vmatpush1.msra.mxu0 0.0
        %811 = vmatprep.subr.mxu0 0.0
        %812 = vmatpush1.msra.mxu0 0.0
        %813 = vmatprep.subr.mxu0 0.0
        %814 = vmatpush1.msra.mxu0 0.0
        %815 = vmatprep.mubr.f32.mxu0 0.0
        %816 = vmatmul.mubr.f32.gmra.mrb[0].mxu0 %v743
        %v817 = vpop.f32.mrb[0].mxu0
        %v818 = vadd.f32 0.0, %v817
        %v819 = vpop.f32.mrb[0].mxu0
        %820 = vmatprep.mubr.f32.mxu0 0.0
        %821 = vmatmul.mubr.f32.gmra.mrb[0].mxu0 %v746
        %v822 = vpop.f32.mrb[0].mxu0
        %v823 = vadd.f32 0.0, %v822
        %v824 = vpop.f32.mrb[0].mxu0
        %825 = vmatprep.mubr.f32.mxu0 0.0
        %826 = vmatmul.mubr.f32.gmra.mrb[0].mxu0 %v749
        %v827 = vpop.f32.mrb[0].mxu0
        %v828 = vadd.f32 0.0, %v827
        %v829 = vpop.f32.mrb[0].mxu0
        %830 = vdwg.mxu0
        %831 = vst.msk [vmem:[#allocation2] sm:$0xff] %vm618, %v818
        %832 = vst.msk [vmem:[#allocation2 + $0x8] sm:$0xff] %vm618, %v823
        %833 = vst.msk [vmem:[#allocation2 + $0x10] sm:$0xff] %vm618, %v828
        %s834 = scalar_lea.vmem %s334, 24
        %v835 = vld [vmem:[%s834] sm:$0xff]
        %v836 = vld [vmem:[%s834 + $0x8] sm:$0xff]
        %v837 = vld [vmem:[%s834 + $0x10] sm:$0xff]
        %838 = vrot.lane.b32.xlu0 %v432, 120
        %v839 = vpop.permute.xlu0 %838
        %840 = vrot.lane.b32.xlu0 %v433, 120
        %v841 = vpop.permute.xlu0 %840
        %842 = vrot.lane.b32.xlu0 %v434, 120
        %v843 = vpop.permute.xlu0 %842
        %v844 = vsel %vm618, %v839, 0
        %v846 = vsel %vm618, %v841, 0
        %v848 = vsel %vm618, %v843, 0
        %850 = vmatprep.subr.mxu0 0.0
        %851 = vmatpush1.msra.mxu0 %v523
        %852 = vmatprep.subr.mxu0 0.0
        %853 = vmatpush1.msra.mxu0 0.0
        %854 = vmatprep.subr.mxu0 0.0
        %855 = vmatpush1.msra.mxu0 0.0
        %856 = vmatprep.subr.mxu0 0.0
        %857 = vmatpush1.msra.mxu0 0.0
        %858 = vmatprep.subr.mxu0 0.0
        %859 = vmatpush1.msra.mxu0 0.0
        %860 = vmatprep.subr.mxu0 0.0
        %861 = vmatpush1.msra.mxu0 0.0
        %862 = vmatprep.subr.mxu0 0.0
        %863 = vmatpush1.msra.mxu0 0.0
        %864 = vmatprep.subr.mxu0 0.0
        %865 = vmatpush1.msra.mxu0 0.0
        %866 = vmatprep.subr.mxu0 0.0
        %867 = vmatpush1.msra.mxu0 0.0
        %868 = vmatprep.subr.mxu0 0.0
        %869 = vmatpush1.msra.mxu0 0.0
        %870 = vmatprep.subr.mxu0 0.0
        %871 = vmatpush1.msra.mxu0 0.0
        %872 = vmatprep.subr.mxu0 0.0
        %873 = vmatpush1.msra.mxu0 0.0
        %874 = vmatprep.subr.mxu0 0.0
        %875 = vmatpush1.msra.mxu0 0.0
        %876 = vmatprep.subr.mxu0 0.0
        %877 = vmatpush1.msra.mxu0 0.0
        %878 = vmatprep.subr.mxu0 0.0
        %879 = vmatpush1.msra.mxu0 0.0
        %880 = vmatprep.subr.mxu0 0.0
        %881 = vmatpush1.msra.mxu0 0.0
        %882 = vmatprep.subr.mxu0 0.0
        %883 = vmatpush1.msra.mxu0 0.0
        %884 = vmatprep.subr.mxu0 0.0
        %885 = vmatpush1.msra.mxu0 0.0
        %886 = vmatprep.subr.mxu0 0.0
        %887 = vmatpush1.msra.mxu0 0.0
        %888 = vmatprep.subr.mxu0 0.0
        %889 = vmatpush1.msra.mxu0 0.0
        %890 = vmatprep.subr.mxu0 0.0
        %891 = vmatpush1.msra.mxu0 0.0
        %892 = vmatprep.subr.mxu0 0.0
        %893 = vmatpush1.msra.mxu0 0.0
        %894 = vmatprep.subr.mxu0 0.0
        %895 = vmatpush1.msra.mxu0 0.0
        %896 = vmatprep.subr.mxu0 0.0
        %897 = vmatpush1.msra.mxu0 0.0
        %898 = vmatprep.subr.mxu0 0.0
        %899 = vmatpush1.msra.mxu0 0.0
        %900 = vmatprep.subr.mxu0 0.0
        %901 = vmatpush1.msra.mxu0 0.0
        %902 = vmatprep.subr.mxu0 0.0
        %903 = vmatpush1.msra.mxu0 0.0
        %904 = vmatprep.subr.mxu0 0.0
        %905 = vmatpush1.msra.mxu0 0.0
        %906 = vmatprep.subr.mxu0 0.0
        %907 = vmatpush1.msra.mxu0 0.0
        %908 = vmatprep.subr.mxu0 0.0
        %909 = vmatpush1.msra.mxu0 0.0
        %910 = vmatprep.subr.mxu0 0.0
        %911 = vmatpush1.msra.mxu0 0.0
        %912 = vmatprep.subr.mxu0 0.0
        %913 = vmatpush1.msra.mxu0 0.0
        %914 = vmatprep.mubr.f32.mxu0 0.0
        %915 = vmatmul.mubr.f32.gmra.mrb[0].mxu0 %v844
        %v916 = vpop.f32.mrb[0].mxu0
        %v917 = vadd.f32 %v835, %v916
        %v918 = vpop.f32.mrb[0].mxu0
        %919 = vmatprep.mubr.f32.mxu0 0.0
        %920 = vmatmul.mubr.f32.gmra.mrb[0].mxu0 %v846
        %v921 = vpop.f32.mrb[0].mxu0
        %v922 = vadd.f32 %v836, %v921
        %v923 = vpop.f32.mrb[0].mxu0
        %924 = vmatprep.mubr.f32.mxu0 0.0
        %925 = vmatmul.mubr.f32.gmra.mrb[0].mxu0 %v848
        %v926 = vpop.f32.mrb[0].mxu0
        %v927 = vadd.f32 %v837, %v926
        %v928 = vpop.f32.mrb[0].mxu0
        %929 = vdwg.mxu0
        %v930 = vsel %vm708, %v917, -inf
        %931 = vmax.xlane.f32.xlu0 %v930
        %v932 = vpop.xlane.xlu0 %931
        %v933 = vsel %vm708, %v922, -inf
        %934 = vmax.xlane.f32.xlu0 %v933
        %v935 = vpop.xlane.xlu0 %934
        %v936 = vsel %vm708, %v927, -inf
        %937 = vmax.xlane.f32.xlu0 %v936
        %v938 = vpop.xlane.xlu0 %937
        %v939 = vsub.f32 %v917, %v932
        %v940 = vsub.f32 %v922, %v935
        %v941 = vsub.f32 %v927, %v938
        %v942 = vmul.f32 %v939, 1.442695
        %v943 = vpow.pop %v942
        %v944 = vmul.f32 %v940, 1.442695
        %v945 = vpow.pop %v944
        %v946 = vmul.f32 %v941, 1.442695
        %v947 = vpow.pop %v946
        %v948 = vsel %vm708, %v943, 0.0
        %949 = vadd.xlane.f32.xlu0 %v948
        %v950 = vpop.xlane.xlu0 %949
        %v951 = vsel %vm708, %v945, 0.0
        %952 = vadd.xlane.f32.xlu0 %v951
        %v953 = vpop.xlane.xlu0 %952
        %v954 = vsel %vm708, %v947, 0.0
        %955 = vadd.xlane.f32.xlu0 %v954
        %v956 = vpop.xlane.xlu0 %955
        %v957 = vrcp.pop %v950
        %v958 = vrcp.pop %v953
        %v959 = vrcp.pop %v956
        %v960 = vmul.f32 %v943, %v957
        %v961 = vmul.f32 %v945, %v958
        %v962 = vmul.f32 %v947, %v959
        %965 = vrot.lane.b32.xlu0 %v607, 120
        %v966 = vpop.permute.xlu0 %965
        %967 = vrot.lane.b32.xlu0 %v612, 120
        %v968 = vpop.permute.xlu0 %967
        %v972 = vsel %vm708, %v960, 0
        %v975 = vsel %vm708, %v961, 0
        %v978 = vsel %vm708, %v962, 0
        %980 = vmatprep.subr.mxu0 0.0
        %981 = vmatpush1.msra.mxu0 %v966
        %982 = vmatprep.subr.mxu0 0.0
        %983 = vmatpush1.msra.mxu0 %v968
        %984 = vmatprep.subr.mxu0 0.0
        %985 = vmatpush1.msra.mxu0 0.0
        %986 = vmatprep.subr.mxu0 0.0
        %987 = vmatpush1.msra.mxu0 0.0
        %988 = vmatprep.subr.mxu0 0.0
        %989 = vmatpush1.msra.mxu0 0.0
        %990 = vmatprep.subr.mxu0 0.0
        %991 = vmatpush1.msra.mxu0 0.0
        %992 = vmatprep.subr.mxu0 0.0
        %993 = vmatpush1.msra.mxu0 0.0
        %994 = vmatprep.subr.mxu0 0.0
        %995 = vmatpush1.msra.mxu0 0.0
        %996 = vmatprep.subr.mxu0 0.0
        %997 = vmatpush1.msra.mxu0 0.0
        %998 = vmatprep.subr.mxu0 0.0
        %999 = vmatpush1.msra.mxu0 0.0
        %1000 = vmatprep.subr.mxu0 0.0
        %1001 = vmatpush1.msra.mxu0 0.0
        %1002 = vmatprep.subr.mxu0 0.0
        %1003 = vmatpush1.msra.mxu0 0.0
        %1004 = vmatprep.subr.mxu0 0.0
        %1005 = vmatpush1.msra.mxu0 0.0
        %1006 = vmatprep.subr.mxu0 0.0
        %1007 = vmatpush1.msra.mxu0 0.0
        %1008 = vmatprep.subr.mxu0 0.0
        %1009 = vmatpush1.msra.mxu0 0.0
        %1010 = vmatprep.subr.mxu0 0.0
        %1011 = vmatpush1.msra.mxu0 0.0
        %1012 = vmatprep.subr.mxu0 0.0
        %1013 = vmatpush1.msra.mxu0 0.0
        %1014 = vmatprep.subr.mxu0 0.0
        %1015 = vmatpush1.msra.mxu0 0.0
        %1016 = vmatprep.subr.mxu0 0.0
        %1017 = vmatpush1.msra.mxu0 0.0
        %1018 = vmatprep.subr.mxu0 0.0
        %1019 = vmatpush1.msra.mxu0 0.0
        %1020 = vmatprep.subr.mxu0 0.0
        %1021 = vmatpush1.msra.mxu0 0.0
        %1022 = vmatprep.subr.mxu0 0.0
        %1023 = vmatpush1.msra.mxu0 0.0
        %1024 = vmatprep.subr.mxu0 0.0
        %1025 = vmatpush1.msra.mxu0 0.0
        %1026 = vmatprep.subr.mxu0 0.0
        %1027 = vmatpush1.msra.mxu0 0.0
        %1028 = vmatprep.subr.mxu0 0.0
        %1029 = vmatpush1.msra.mxu0 0.0
        %1030 = vmatprep.subr.mxu0 0.0
        %1031 = vmatpush1.msra.mxu0 0.0
        %1032 = vmatprep.subr.mxu0 0.0
        %1033 = vmatpush1.msra.mxu0 0.0
        %1034 = vmatprep.subr.mxu0 0.0
        %1035 = vmatpush1.msra.mxu0 0.0
        %1036 = vmatprep.subr.mxu0 0.0
        %1037 = vmatpush1.msra.mxu0 0.0
        %1038 = vmatprep.subr.mxu0 0.0
        %1039 = vmatpush1.msra.mxu0 0.0
        %1040 = vmatprep.subr.mxu0 0.0
        %1041 = vmatpush1.msra.mxu0 0.0
        %1042 = vmatprep.subr.mxu0 0.0
        %1043 = vmatpush1.msra.mxu0 0.0
        %1044 = vmatprep.mubr.f32.mxu0 0.0
        %1045 = vmatmul.mubr.f32.gmra.mrb[0].mxu0 %v972
        %v1046 = vpop.f32.mrb[0].mxu0
        %v1047 = vadd.f32 0.0, %v1046
        %v1048 = vpop.f32.mrb[0].mxu0
        %1049 = vmatprep.mubr.f32.mxu0 0.0
        %1050 = vmatmul.mubr.f32.gmra.mrb[0].mxu0 %v975
        %v1051 = vpop.f32.mrb[0].mxu0
        %v1052 = vadd.f32 0.0, %v1051
        %v1053 = vpop.f32.mrb[0].mxu0
        %1054 = vmatprep.mubr.f32.mxu0 0.0
        %1055 = vmatmul.mubr.f32.gmra.mrb[0].mxu0 %v978
        %v1056 = vpop.f32.mrb[0].mxu0
        %v1057 = vadd.f32 0.0, %v1056
        %v1058 = vpop.f32.mrb[0].mxu0
        %1059 = vdwg.mxu0
        %1063 = vrot.lane.b32.xlu0 %v1047, 8
        %v1064 = vpop.permute.xlu0 %1063
        %1065 = vrot.lane.b32.xlu0 %v1052, 8
        %v1066 = vpop.permute.xlu0 %1065
        %1067 = vrot.lane.b32.xlu0 %v1057, 8
        %v1068 = vpop.permute.xlu0 %1067
        %vm1072 = vcmask 130112
        %1073 = vst.msk [vmem:[#allocation2] sm:$0xff] %vm1072, %v1064
        %1074 = vst.msk [vmem:[#allocation2 + $0x8] sm:$0xff] %vm1072, %v1066
        %1075 = vst.msk [vmem:[#allocation2 + $0x10] sm:$0xff] %vm1072, %v1068
        %s1076 = scalar_lea.vmem %s334, 48
        %v1077 = vld [vmem:[%s1076] sm:$0xff]
        %v1078 = vld [vmem:[%s1076 + $0x8] sm:$0xff]
        %v1079 = vld [vmem:[%s1076 + $0x10] sm:$0xff]
        %1080 = vrot.lane.b32.xlu0 %v432, 112
        %v1081 = vpop.permute.xlu0 %1080
        %1082 = vrot.lane.b32.xlu0 %v433, 112
        %v1083 = vpop.permute.xlu0 %1082
        %1084 = vrot.lane.b32.xlu0 %v434, 112
        %v1085 = vpop.permute.xlu0 %1084
        %v1086 = vsel %vm618, %v1081, 0
        %v1088 = vsel %vm618, %v1083, 0
        %v1090 = vsel %vm618, %v1085, 0
        %1092 = vmatprep.subr.mxu0 0.0
        %1093 = vmatpush1.msra.mxu0 %v528
        %1094 = vmatprep.subr.mxu0 0.0
        %1095 = vmatpush1.msra.mxu0 0.0
        %1096 = vmatprep.subr.mxu0 0.0
        %1097 = vmatpush1.msra.mxu0 0.0
        %1098 = vmatprep.subr.mxu0 0.0
        %1099 = vmatpush1.msra.mxu0 0.0
        %1100 = vmatprep.subr.mxu0 0.0
        %1101 = vmatpush1.msra.mxu0 0.0
        %1102 = vmatprep.subr.mxu0 0.0
        %1103 = vmatpush1.msra.mxu0 0.0
        %1104 = vmatprep.subr.mxu0 0.0
        %1105 = vmatpush1.msra.mxu0 0.0
        %1106 = vmatprep.subr.mxu0 0.0
        %1107 = vmatpush1.msra.mxu0 0.0
        %1108 = vmatprep.subr.mxu0 0.0
        %1109 = vmatpush1.msra.mxu0 0.0
        %1110 = vmatprep.subr.mxu0 0.0
        %1111 = vmatpush1.msra.mxu0 0.0
        %1112 = vmatprep.subr.mxu0 0.0
        %1113 = vmatpush1.msra.mxu0 0.0
        %1114 = vmatprep.subr.mxu0 0.0
        %1115 = vmatpush1.msra.mxu0 0.0
        %1116 = vmatprep.subr.mxu0 0.0
        %1117 = vmatpush1.msra.mxu0 0.0
        %1118 = vmatprep.subr.mxu0 0.0
        %1119 = vmatpush1.msra.mxu0 0.0
        %1120 = vmatprep.subr.mxu0 0.0
        %1121 = vmatpush1.msra.mxu0 0.0
        %1122 = vmatprep.subr.mxu0 0.0
        %1123 = vmatpush1.msra.mxu0 0.0
        %1124 = vmatprep.subr.mxu0 0.0
        %1125 = vmatpush1.msra.mxu0 0.0
        %1126 = vmatprep.subr.mxu0 0.0
        %1127 = vmatpush1.msra.mxu0 0.0
        %1128 = vmatprep.subr.mxu0 0.0
        %1129 = vmatpush1.msra.mxu0 0.0
        %1130 = vmatprep.subr.mxu0 0.0
        %1131 = vmatpush1.msra.mxu0 0.0
        %1132 = vmatprep.subr.mxu0 0.0
        %1133 = vmatpush1.msra.mxu0 0.0
        %1134 = vmatprep.subr.mxu0 0.0
        %1135 = vmatpush1.msra.mxu0 0.0
        %1136 = vmatprep.subr.mxu0 0.0
        %1137 = vmatpush1.msra.mxu0 0.0
        %1138 = vmatprep.subr.mxu0 0.0
        %1139 = vmatpush1.msra.mxu0 0.0
        %1140 = vmatprep.subr.mxu0 0.0
        %1141 = vmatpush1.msra.mxu0 0.0
        %1142 = vmatprep.subr.mxu0 0.0
        %1143 = vmatpush1.msra.mxu0 0.0
        %1144 = vmatprep.subr.mxu0 0.0
        %1145 = vmatpush1.msra.mxu0 0.0
        %1146 = vmatprep.subr.mxu0 0.0
        %1147 = vmatpush1.msra.mxu0 0.0
        %1148 = vmatprep.subr.mxu0 0.0
        %1149 = vmatpush1.msra.mxu0 0.0
        %1150 = vmatprep.subr.mxu0 0.0
        %1151 = vmatpush1.msra.mxu0 0.0
        %1152 = vmatprep.subr.mxu0 0.0
        %1153 = vmatpush1.msra.mxu0 0.0
        %1154 = vmatprep.subr.mxu0 0.0
        %1155 = vmatpush1.msra.mxu0 0.0
        %1156 = vmatprep.mubr.f32.mxu0 0.0
        %1157 = vmatmul.mubr.f32.gmra.mrb[0].mxu0 %v1086
        %v1158 = vpop.f32.mrb[0].mxu0
        %v1159 = vadd.f32 %v1077, %v1158
        %v1160 = vpop.f32.mrb[0].mxu0
        %1161 = vmatprep.mubr.f32.mxu0 0.0
        %1162 = vmatmul.mubr.f32.gmra.mrb[0].mxu0 %v1088
        %v1163 = vpop.f32.mrb[0].mxu0
        %v1164 = vadd.f32 %v1078, %v1163
        %v1165 = vpop.f32.mrb[0].mxu0
        %1166 = vmatprep.mubr.f32.mxu0 0.0
        %1167 = vmatmul.mubr.f32.gmra.mrb[0].mxu0 %v1090
        %v1168 = vpop.f32.mrb[0].mxu0
        %v1169 = vadd.f32 %v1079, %v1168
        %v1170 = vpop.f32.mrb[0].mxu0
        %1171 = vdwg.mxu0
        %v1172 = vsel %vm708, %v1159, -inf
        %1173 = vmax.xlane.f32.xlu0 %v1172
        %v1174 = vpop.xlane.xlu0 %1173
        %v1175 = vsel %vm708, %v1164, -inf
        %1176 = vmax.xlane.f32.xlu0 %v1175
        %v1177 = vpop.xlane.xlu0 %1176
        %v1178 = vsel %vm708, %v1169, -inf
        %1179 = vmax.xlane.f32.xlu0 %v1178
        %v1180 = vpop.xlane.xlu0 %1179
        %v1181 = vsub.f32 %v1159, %v1174
        %v1182 = vsub.f32 %v1164, %v1177
        %v1183 = vsub.f32 %v1169, %v1180
        %v1184 = vmul.f32 %v1181, 1.442695
        %v1185 = vpow.pop %v1184
        %v1186 = vmul.f32 %v1182, 1.442695
        %v1187 = vpow.pop %v1186
        %v1188 = vmul.f32 %v1183, 1.442695
        %v1189 = vpow.pop %v1188
        %v1190 = vsel %vm708, %v1185, 0.0
        %1191 = vadd.xlane.f32.xlu0 %v1190
        %v1192 = vpop.xlane.xlu0 %1191
        %v1193 = vsel %vm708, %v1187, 0.0
        %1194 = vadd.xlane.f32.xlu0 %v1193
        %v1195 = vpop.xlane.xlu0 %1194
        %v1196 = vsel %vm708, %v1189, 0.0
        %1197 = vadd.xlane.f32.xlu0 %v1196
        %v1198 = vpop.xlane.xlu0 %1197
        %v1199 = vrcp.pop %v1192
        %v1200 = vrcp.pop %v1195
        %v1201 = vrcp.pop %v1198
        %v1202 = vmul.f32 %v1185, %v1199
        %v1203 = vmul.f32 %v1187, %v1200
        %v1204 = vmul.f32 %v1189, %v1201
        %1205 = vrot.lane.b32.xlu0 %v607, 112
        %v1206 = vpop.permute.xlu0 %1205
        %1207 = vrot.lane.b32.xlu0 %v612, 112
        %v1208 = vpop.permute.xlu0 %1207
        %v1212 = vsel %vm708, %v1202, 0
        %v1215 = vsel %vm708, %v1203, 0
        %v1218 = vsel %vm708, %v1204, 0
        %1220 = vmatprep.subr.mxu0 0.0
        %1221 = vmatpush1.msra.mxu0 %v1206
        %1222 = vmatprep.subr.mxu0 0.0
        %1223 = vmatpush1.msra.mxu0 %v1208
        %1224 = vmatprep.subr.mxu0 0.0
        %1225 = vmatpush1.msra.mxu0 0.0
        %1226 = vmatprep.subr.mxu0 0.0
        %1227 = vmatpush1.msra.mxu0 0.0
        %1228 = vmatprep.subr.mxu0 0.0
        %1229 = vmatpush1.msra.mxu0 0.0
        %1230 = vmatprep.subr.mxu0 0.0
        %1231 = vmatpush1.msra.mxu0 0.0
        %1232 = vmatprep.subr.mxu0 0.0
        %1233 = vmatpush1.msra.mxu0 0.0
        %1234 = vmatprep.subr.mxu0 0.0
        %1235 = vmatpush1.msra.mxu0 0.0
        %1236 = vmatprep.subr.mxu0 0.0
        %1237 = vmatpush1.msra.mxu0 0.0
        %1238 = vmatprep.subr.mxu0 0.0
        %1239 = vmatpush1.msra.mxu0 0.0
        %1240 = vmatprep.subr.mxu0 0.0
        %1241 = vmatpush1.msra.mxu0 0.0
        %1242 = vmatprep.subr.mxu0 0.0
        %1243 = vmatpush1.msra.mxu0 0.0
        %1244 = vmatprep.subr.mxu0 0.0
        %1245 = vmatpush1.msra.mxu0 0.0
        %1246 = vmatprep.subr.mxu0 0.0
        %1247 = vmatpush1.msra.mxu0 0.0
        %1248 = vmatprep.subr.mxu0 0.0
        %1249 = vmatpush1.msra.mxu0 0.0
        %1250 = vmatprep.subr.mxu0 0.0
        %1251 = vmatpush1.msra.mxu0 0.0
        %1252 = vmatprep.subr.mxu0 0.0
        %1253 = vmatpush1.msra.mxu0 0.0
        %1254 = vmatprep.subr.mxu0 0.0
        %1255 = vmatpush1.msra.mxu0 0.0
        %1256 = vmatprep.subr.mxu0 0.0
        %1257 = vmatpush1.msra.mxu0 0.0
        %1258 = vmatprep.subr.mxu0 0.0
        %1259 = vmatpush1.msra.mxu0 0.0
        %1260 = vmatprep.subr.mxu0 0.0
        %1261 = vmatpush1.msra.mxu0 0.0
        %1262 = vmatprep.subr.mxu0 0.0
        %1263 = vmatpush1.msra.mxu0 0.0
        %1264 = vmatprep.subr.mxu0 0.0
        %1265 = vmatpush1.msra.mxu0 0.0
        %1266 = vmatprep.subr.mxu0 0.0
        %1267 = vmatpush1.msra.mxu0 0.0
        %1268 = vmatprep.subr.mxu0 0.0
        %1269 = vmatpush1.msra.mxu0 0.0
        %1270 = vmatprep.subr.mxu0 0.0
        %1271 = vmatpush1.msra.mxu0 0.0
        %1272 = vmatprep.subr.mxu0 0.0
        %1273 = vmatpush1.msra.mxu0 0.0
        %1274 = vmatprep.subr.mxu0 0.0
        %1275 = vmatpush1.msra.mxu0 0.0
        %1276 = vmatprep.subr.mxu0 0.0
        %1277 = vmatpush1.msra.mxu0 0.0
        %1278 = vmatprep.subr.mxu0 0.0
        %1279 = vmatpush1.msra.mxu0 0.0
        %1280 = vmatprep.subr.mxu0 0.0
        %1281 = vmatpush1.msra.mxu0 0.0
        %1282 = vmatprep.subr.mxu0 0.0
        %1283 = vmatpush1.msra.mxu0 0.0
        %1284 = vmatprep.mubr.f32.mxu0 0.0
        %1285 = vmatmul.mubr.f32.gmra.mrb[0].mxu0 %v1212
        %v1286 = vpop.f32.mrb[0].mxu0
        %v1287 = vadd.f32 0.0, %v1286
        %v1288 = vpop.f32.mrb[0].mxu0
        %1289 = vmatprep.mubr.f32.mxu0 0.0
        %1290 = vmatmul.mubr.f32.gmra.mrb[0].mxu0 %v1215
        %v1291 = vpop.f32.mrb[0].mxu0
        %v1292 = vadd.f32 0.0, %v1291
        %v1293 = vpop.f32.mrb[0].mxu0
        %1294 = vmatprep.mubr.f32.mxu0 0.0
        %1295 = vmatmul.mubr.f32.gmra.mrb[0].mxu0 %v1218
        %v1296 = vpop.f32.mrb[0].mxu0
        %v1297 = vadd.f32 0.0, %v1296
        %v1298 = vpop.f32.mrb[0].mxu0
        %1299 = vdwg.mxu0
        %1303 = vrot.lane.b32.xlu0 %v1287, 16
        %v1304 = vpop.permute.xlu0 %1303
        %1305 = vrot.lane.b32.xlu0 %v1292, 16
        %v1306 = vpop.permute.xlu0 %1305
        %1307 = vrot.lane.b32.xlu0 %v1297, 16
        %v1308 = vpop.permute.xlu0 %1307
        %vm1312 = vcmask 195712
        %1313 = vst.msk [vmem:[#allocation2] sm:$0xff] %vm1312, %v1304
        %1314 = vst.msk [vmem:[#allocation2 + $0x8] sm:$0xff] %vm1312, %v1306
        %1315 = vst.msk [vmem:[#allocation2 + $0x10] sm:$0xff] %vm1312, %v1308
        %s1316 = scalar_lea.vmem %s334, 72
        %v1317 = vld [vmem:[%s1316] sm:$0xff]
        %v1318 = vld [vmem:[%s1316 + $0x8] sm:$0xff]
        %v1319 = vld [vmem:[%s1316 + $0x10] sm:$0xff]
        %1320 = vrot.lane.b32.xlu0 %v432, 104
        %v1321 = vpop.permute.xlu0 %1320
        %1322 = vrot.lane.b32.xlu0 %v433, 104
        %v1323 = vpop.permute.xlu0 %1322
        %1324 = vrot.lane.b32.xlu0 %v434, 104
        %v1325 = vpop.permute.xlu0 %1324
        %v1326 = vsel %vm618, %v1321, 0
        %v1328 = vsel %vm618, %v1323, 0
        %v1330 = vsel %vm618, %v1325, 0
        %1332 = vmatprep.subr.mxu0 0.0
        %1333 = vmatpush1.msra.mxu0 %v533
        %1334 = vmatprep.subr.mxu0 0.0
        %1335 = vmatpush1.msra.mxu0 0.0
        %1336 = vmatprep.subr.mxu0 0.0
        %1337 = vmatpush1.msra.mxu0 0.0
        %1338 = vmatprep.subr.mxu0 0.0
        %1339 = vmatpush1.msra.mxu0 0.0
        %1340 = vmatprep.subr.mxu0 0.0
        %1341 = vmatpush1.msra.mxu0 0.0
        %1342 = vmatprep.subr.mxu0 0.0
        %1343 = vmatpush1.msra.mxu0 0.0
        %1344 = vmatprep.subr.mxu0 0.0
        %1345 = vmatpush1.msra.mxu0 0.0
        %1346 = vmatprep.subr.mxu0 0.0
        %1347 = vmatpush1.msra.mxu0 0.0
        %1348 = vmatprep.subr.mxu0 0.0
        %1349 = vmatpush1.msra.mxu0 0.0
        %1350 = vmatprep.subr.mxu0 0.0
        %1351 = vmatpush1.msra.mxu0 0.0
        %1352 = vmatprep.subr.mxu0 0.0
        %1353 = vmatpush1.msra.mxu0 0.0
        %1354 = vmatprep.subr.mxu0 0.0
        %1355 = vmatpush1.msra.mxu0 0.0
        %1356 = vmatprep.subr.mxu0 0.0
        %1357 = vmatpush1.msra.mxu0 0.0
        %1358 = vmatprep.subr.mxu0 0.0
        %1359 = vmatpush1.msra.mxu0 0.0
        %1360 = vmatprep.subr.mxu0 0.0
        %1361 = vmatpush1.msra.mxu0 0.0
        %1362 = vmatprep.subr.mxu0 0.0
        %1363 = vmatpush1.msra.mxu0 0.0
        %1364 = vmatprep.subr.mxu0 0.0
        %1365 = vmatpush1.msra.mxu0 0.0
        %1366 = vmatprep.subr.mxu0 0.0
        %1367 = vmatpush1.msra.mxu0 0.0
        %1368 = vmatprep.subr.mxu0 0.0
        %1369 = vmatpush1.msra.mxu0 0.0
        %1370 = vmatprep.subr.mxu0 0.0
        %1371 = vmatpush1.msra.mxu0 0.0
        %1372 = vmatprep.subr.mxu0 0.0
        %1373 = vmatpush1.msra.mxu0 0.0
        %1374 = vmatprep.subr.mxu0 0.0
        %1375 = vmatpush1.msra.mxu0 0.0
        %1376 = vmatprep.subr.mxu0 0.0
        %1377 = vmatpush1.msra.mxu0 0.0
        %1378 = vmatprep.subr.mxu0 0.0
        %1379 = vmatpush1.msra.mxu0 0.0
        %1380 = vmatprep.subr.mxu0 0.0
        %1381 = vmatpush1.msra.mxu0 0.0
        %1382 = vmatprep.subr.mxu0 0.0
        %1383 = vmatpush1.msra.mxu0 0.0
        %1384 = vmatprep.subr.mxu0 0.0
        %1385 = vmatpush1.msra.mxu0 0.0
        %1386 = vmatprep.subr.mxu0 0.0
        %1387 = vmatpush1.msra.mxu0 0.0
        %1388 = vmatprep.subr.mxu0 0.0
        %1389 = vmatpush1.msra.mxu0 0.0
        %1390 = vmatprep.subr.mxu0 0.0
        %1391 = vmatpush1.msra.mxu0 0.0
        %1392 = vmatprep.subr.mxu0 0.0
        %1393 = vmatpush1.msra.mxu0 0.0
        %1394 = vmatprep.subr.mxu0 0.0
        %1395 = vmatpush1.msra.mxu0 0.0
        %1396 = vmatprep.mubr.f32.mxu0 0.0
        %1397 = vmatmul.mubr.f32.gmra.mrb[0].mxu0 %v1326
        %v1398 = vpop.f32.mrb[0].mxu0
        %v1399 = vadd.f32 %v1317, %v1398
        %v1400 = vpop.f32.mrb[0].mxu0
        %1401 = vmatprep.mubr.f32.mxu0 0.0
        %1402 = vmatmul.mubr.f32.gmra.mrb[0].mxu0 %v1328
        %v1403 = vpop.f32.mrb[0].mxu0
        %v1404 = vadd.f32 %v1318, %v1403
        %v1405 = vpop.f32.mrb[0].mxu0
        %1406 = vmatprep.mubr.f32.mxu0 0.0
        %1407 = vmatmul.mubr.f32.gmra.mrb[0].mxu0 %v1330
        %v1408 = vpop.f32.mrb[0].mxu0
        %v1409 = vadd.f32 %v1319, %v1408
        %v1410 = vpop.f32.mrb[0].mxu0
        %1411 = vdwg.mxu0
        %v1412 = vsel %vm708, %v1399, -inf
        %1413 = vmax.xlane.f32.xlu0 %v1412
        %v1414 = vpop.xlane.xlu0 %1413
        %v1415 = vsel %vm708, %v1404, -inf
        %1416 = vmax.xlane.f32.xlu0 %v1415
        %v1417 = vpop.xlane.xlu0 %1416
        %v1418 = vsel %vm708, %v1409, -inf
        %1419 = vmax.xlane.f32.xlu0 %v1418
        %v1420 = vpop.xlane.xlu0 %1419
        %v1421 = vsub.f32 %v1399, %v1414
        %v1422 = vsub.f32 %v1404, %v1417
        %v1423 = vsub.f32 %v1409, %v1420
        %v1424 = vmul.f32 %v1421, 1.442695
        %v1425 = vpow.pop %v1424
        %v1426 = vmul.f32 %v1422, 1.442695
        %v1427 = vpow.pop %v1426
        %v1428 = vmul.f32 %v1423, 1.442695
        %v1429 = vpow.pop %v1428
        %v1430 = vsel %vm708, %v1425, 0.0
        %1431 = vadd.xlane.f32.xlu0 %v1430
        %v1432 = vpop.xlane.xlu0 %1431
        %v1433 = vsel %vm708, %v1427, 0.0
        %1434 = vadd.xlane.f32.xlu0 %v1433
        %v1435 = vpop.xlane.xlu0 %1434
        %v1436 = vsel %vm708, %v1429, 0.0
        %1437 = vadd.xlane.f32.xlu0 %v1436
        %v1438 = vpop.xlane.xlu0 %1437
        %v1439 = vrcp.pop %v1432
        %v1440 = vrcp.pop %v1435
        %v1441 = vrcp.pop %v1438
        %v1442 = vmul.f32 %v1425, %v1439
        %v1443 = vmul.f32 %v1427, %v1440
        %v1444 = vmul.f32 %v1429, %v1441
        %1445 = vrot.lane.b32.xlu0 %v607, 104
        %v1446 = vpop.permute.xlu0 %1445
        %1447 = vrot.lane.b32.xlu0 %v612, 104
        %v1448 = vpop.permute.xlu0 %1447
        %v1452 = vsel %vm708, %v1442, 0
        %v1455 = vsel %vm708, %v1443, 0
        %v1458 = vsel %vm708, %v1444, 0
        %1460 = vmatprep.subr.mxu0 0.0
        %1461 = vmatpush1.msra.mxu0 %v1446
        %1462 = vmatprep.subr.mxu0 0.0
        %1463 = vmatpush1.msra.mxu0 %v1448
        %1464 = vmatprep.subr.mxu0 0.0
        %1465 = vmatpush1.msra.mxu0 0.0
        %1466 = vmatprep.subr.mxu0 0.0
        %1467 = vmatpush1.msra.mxu0 0.0
        %1468 = vmatprep.subr.mxu0 0.0
        %1469 = vmatpush1.msra.mxu0 0.0
        %1470 = vmatprep.subr.mxu0 0.0
        %1471 = vmatpush1.msra.mxu0 0.0
        %1472 = vmatprep.subr.mxu0 0.0
        %1473 = vmatpush1.msra.mxu0 0.0
        %1474 = vmatprep.subr.mxu0 0.0
        %1475 = vmatpush1.msra.mxu0 0.0
        %1476 = vmatprep.subr.mxu0 0.0
        %1477 = vmatpush1.msra.mxu0 0.0
        %1478 = vmatprep.subr.mxu0 0.0
        %1479 = vmatpush1.msra.mxu0 0.0
        %1480 = vmatprep.subr.mxu0 0.0
        %1481 = vmatpush1.msra.mxu0 0.0
        %1482 = vmatprep.subr.mxu0 0.0
        %1483 = vmatpush1.msra.mxu0 0.0
        %1484 = vmatprep.subr.mxu0 0.0
        %1485 = vmatpush1.msra.mxu0 0.0
        %1486 = vmatprep.subr.mxu0 0.0
        %1487 = vmatpush1.msra.mxu0 0.0
        %1488 = vmatprep.subr.mxu0 0.0
        %1489 = vmatpush1.msra.mxu0 0.0
        %1490 = vmatprep.subr.mxu0 0.0
        %1491 = vmatpush1.msra.mxu0 0.0
        %1492 = vmatprep.subr.mxu0 0.0
        %1493 = vmatpush1.msra.mxu0 0.0
        %1494 = vmatprep.subr.mxu0 0.0
        %1495 = vmatpush1.msra.mxu0 0.0
        %1496 = vmatprep.subr.mxu0 0.0
        %1497 = vmatpush1.msra.mxu0 0.0
        %1498 = vmatprep.subr.mxu0 0.0
        %1499 = vmatpush1.msra.mxu0 0.0
        %1500 = vmatprep.subr.mxu0 0.0
        %1501 = vmatpush1.msra.mxu0 0.0
        %1502 = vmatprep.subr.mxu0 0.0
        %1503 = vmatpush1.msra.mxu0 0.0
        %1504 = vmatprep.subr.mxu0 0.0
        %1505 = vmatpush1.msra.mxu0 0.0
        %1506 = vmatprep.subr.mxu0 0.0
        %1507 = vmatpush1.msra.mxu0 0.0
        %1508 = vmatprep.subr.mxu0 0.0
        %1509 = vmatpush1.msra.mxu0 0.0
        %1510 = vmatprep.subr.mxu0 0.0
        %1511 = vmatpush1.msra.mxu0 0.0
        %1512 = vmatprep.subr.mxu0 0.0
        %1513 = vmatpush1.msra.mxu0 0.0
        %1514 = vmatprep.subr.mxu0 0.0
        %1515 = vmatpush1.msra.mxu0 0.0
        %1516 = vmatprep.subr.mxu0 0.0
        %1517 = vmatpush1.msra.mxu0 0.0
        %1518 = vmatprep.subr.mxu0 0.0
        %1519 = vmatpush1.msra.mxu0 0.0
        %1520 = vmatprep.subr.mxu0 0.0
        %1521 = vmatpush1.msra.mxu0 0.0
        %1522 = vmatprep.subr.mxu0 0.0
        %1523 = vmatpush1.msra.mxu0 0.0
        %1524 = vmatprep.mubr.f32.mxu0 0.0
        %1525 = vmatmul.mubr.f32.gmra.mrb[0].mxu0 %v1452
        %v1526 = vpop.f32.mrb[0].mxu0
        %v1527 = vadd.f32 0.0, %v1526
        %v1528 = vpop.f32.mrb[0].mxu0
        %1529 = vmatprep.mubr.f32.mxu0 0.0
        %1530 = vmatmul.mubr.f32.gmra.mrb[0].mxu0 %v1455
        %v1531 = vpop.f32.mrb[0].mxu0
        %v1532 = vadd.f32 0.0, %v1531
        %v1533 = vpop.f32.mrb[0].mxu0
        %1534 = vmatprep.mubr.f32.mxu0 0.0
        %1535 = vmatmul.mubr.f32.gmra.mrb[0].mxu0 %v1458
        %v1536 = vpop.f32.mrb[0].mxu0
        %v1537 = vadd.f32 0.0, %v1536
        %v1538 = vpop.f32.mrb[0].mxu0
        %1539 = vdwg.mxu0
        %1543 = vrot.lane.b32.xlu0 %v1527, 24
        %v1544 = vpop.permute.xlu0 %1543
        %1545 = vrot.lane.b32.xlu0 %v1532, 24
        %v1546 = vpop.permute.xlu0 %1545
        %1547 = vrot.lane.b32.xlu0 %v1537, 24
        %v1548 = vpop.permute.xlu0 %1547
        %vm1552 = vcmask 261312
        %1553 = vst.msk [vmem:[#allocation2] sm:$0xff] %vm1552, %v1544
        %1554 = vst.msk [vmem:[#allocation2 + $0x8] sm:$0xff] %vm1552, %v1546
        %1555 = vst.msk [vmem:[#allocation2 + $0x10] sm:$0xff] %vm1552, %v1548
        %v1556 = vld [vmem:[#allocation2] sm:$0xff]
        %v1557 = vld [vmem:[#allocation2 + $0x8] sm:$0xff]
        %v1558 = vld [vmem:[#allocation2 + $0x10] sm:$0xff]
        %v1559 = vld [vmem:[%s5] sm:$0xff]
        %v1560 = vld [vmem:[%s5 + $0x8] sm:$0xff]
        %v1561 = vld [vmem:[%s5 + $0x10] sm:$0xff]
        %v1562 = vld [vmem:[%s5 + $0x18] sm:$0xff]
        %v1563 = vld [vmem:[%s6] sm:$0x1]
        %v1565 = vlaneseq
        %v1566 = vshrl.u32 %v1565, 7
        %v1567 = vsub.s32 0, %v1566
        %v1568 = vrot.slane %v1563, %v1567
        %v1571 = vsel %vm342, %v1556, 0
        %v1574 = vsel %vm342, %v1557, 0
        %v1577 = vsel %vm342, %v1558, 0
        %1579 = vmatprep.subr.mxu0 0.0
        %1580 = vmatpush1.msra.mxu0 %v1559
        %1581 = vmatprep.subr.mxu0 0.0
        %1582 = vmatpush1.msra.mxu0 %v1560
        %1583 = vmatprep.subr.mxu0 0.0
        %1584 = vmatpush1.msra.mxu0 %v1561
        %1585 = vmatprep.subr.mxu0 0.0
        %1586 = vmatpush1.msra.mxu0 %v1562
        %1587 = vmatprep.subr.mxu0 0.0
        %1588 = vmatpush1.msra.mxu0 0.0
        %1589 = vmatprep.subr.mxu0 0.0
        %1590 = vmatpush1.msra.mxu0 0.0
        %1591 = vmatprep.subr.mxu0 0.0
        %1592 = vmatpush1.msra.mxu0 0.0
        %1593 = vmatprep.subr.mxu0 0.0
        %1594 = vmatpush1.msra.mxu0 0.0
        %1595 = vmatprep.subr.mxu0 0.0
        %1596 = vmatpush1.msra.mxu0 0.0
        %1597 = vmatprep.subr.mxu0 0.0
        %1598 = vmatpush1.msra.mxu0 0.0
        %1599 = vmatprep.subr.mxu0 0.0
        %1600 = vmatpush1.msra.mxu0 0.0
        %1601 = vmatprep.subr.mxu0 0.0
        %1602 = vmatpush1.msra.mxu0 0.0
        %1603 = vmatprep.subr.mxu0 0.0
        %1604 = vmatpush1.msra.mxu0 0.0
        %1605 = vmatprep.subr.mxu0 0.0
        %1606 = vmatpush1.msra.mxu0 0.0
        %1607 = vmatprep.subr.mxu0 0.0
        %1608 = vmatpush1.msra.mxu0 0.0
        %1609 = vmatprep.subr.mxu0 0.0
        %1610 = vmatpush1.msra.mxu0 0.0
        %1611 = vmatprep.subr.mxu0 0.0
        %1612 = vmatpush1.msra.mxu0 0.0
        %1613 = vmatprep.subr.mxu0 0.0
        %1614 = vmatpush1.msra.mxu0 0.0
        %1615 = vmatprep.subr.mxu0 0.0
        %1616 = vmatpush1.msra.mxu0 0.0
        %1617 = vmatprep.subr.mxu0 0.0
        %1618 = vmatpush1.msra.mxu0 0.0
        %1619 = vmatprep.subr.mxu0 0.0
        %1620 = vmatpush1.msra.mxu0 0.0
        %1621 = vmatprep.subr.mxu0 0.0
        %1622 = vmatpush1.msra.mxu0 0.0
        %1623 = vmatprep.subr.mxu0 0.0
        %1624 = vmatpush1.msra.mxu0 0.0
        %1625 = vmatprep.subr.mxu0 0.0
        %1626 = vmatpush1.msra.mxu0 0.0
        %1627 = vmatprep.subr.mxu0 0.0
        %1628 = vmatpush1.msra.mxu0 0.0
        %1629 = vmatprep.subr.mxu0 0.0
        %1630 = vmatpush1.msra.mxu0 0.0
        %1631 = vmatprep.subr.mxu0 0.0
        %1632 = vmatpush1.msra.mxu0 0.0
        %1633 = vmatprep.subr.mxu0 0.0
        %1634 = vmatpush1.msra.mxu0 0.0
        %1635 = vmatprep.subr.mxu0 0.0
        %1636 = vmatpush1.msra.mxu0 0.0
        %1637 = vmatprep.subr.mxu0 0.0
        %1638 = vmatpush1.msra.mxu0 0.0
        %1639 = vmatprep.subr.mxu0 0.0
        %1640 = vmatpush1.msra.mxu0 0.0
        %1641 = vmatprep.subr.mxu0 0.0
        %1642 = vmatpush1.msra.mxu0 0.0
        %1643 = vmatprep.mubr.f32.mxu0 0.0
        %1644 = vmatmul.mubr.f32.gmra.mrb[0].mxu0 %v1571
        %v1645 = vpop.f32.mrb[0].mxu0
        %v1646 = vadd.f32 %v1568, %v1645
        %v1647 = vpop.f32.mrb[0].mxu0
        %1648 = vmatprep.mubr.f32.mxu0 0.0
        %1649 = vmatmul.mubr.f32.gmra.mrb[0].mxu0 %v1574
        %v1650 = vpop.f32.mrb[0].mxu0
        %v1651 = vadd.f32 %v1568, %v1650
        %v1652 = vpop.f32.mrb[0].mxu0
        %1653 = vmatprep.mubr.f32.mxu0 0.0
        %1654 = vmatmul.mubr.f32.gmra.mrb[0].mxu0 %v1577
        %v1655 = vpop.f32.mrb[0].mxu0
        %v1656 = vadd.f32 %v1568, %v1655
        %v1657 = vpop.f32.mrb[0].mxu0
        %1658 = vdwg.mxu0
        %1659 = vst.msk [vmem:[%s324] sm:$0xff] %vm342, %v1646
        %1660 = vst.msk [vmem:[%s317] sm:$0xff] %vm342, %v1651
        %1661 = vst.msk [vmem:[%s317 + $0x8] sm:$0xff] %vm342, %v1656
        %s1662 = sand.u32 %s191, 1
        %s1663 = scalar_lea.sflag [#allocation4], %s1662
        %s1664 = sand.u32 %s191, 1
        %s1665 = smul.addr %s1664, 16
        %s1666 = scalar_lea.vmem [#allocation3], %s1665
        %s1667 = sand.u32 %s217, 1
        %s1668 = scalar_lea.sflag [#allocation6], %s1667
        %s1669 = sand.u32 %s217, 1
        %s1670 = smul.addr %s1669, 8
        %s1671 = scalar_lea.vmem [#allocation5], %s1670
        // Predicated region
        $region49: #{double_attention_forward.1} parent=47 // pred_check
          %p1672 = pneg %p201
        $region50: #{double_attention_forward.1} parent=47 // pred_check_branch
          %1674 = sbr.rel (%p1672) target = $region52
        $region51: #{double_attention_forward.1} parent=47 // pred_region
          %s1676 = ssub.s32 256, 256
          %1677 = vsyncadd %s1663, %s1676
          %s1678 = smul.addr %s26, 2
          %s1679 = smul.addr %s1678, 128
          %s1680 = scalar_lea.hbm %s7, %s1679
          %s1681 = sshll.u32 %s1666, 4
          %s1682 = int_to_ptr.vmem [resolvable:$true] %s1681
          %1687 = dma.vmem_to_hbm [thread:$0]  %s1682, 256, %s1680, %s1663, 128, 128, 8
        $region52: #{double_attention_forward.1} parent=47 // pred_fallthru
          _
        // Predicated region
        $region53: #{double_attention_forward.1} parent=47 // pred_check
          %p1688 = pneg %p227
        $region54: #{double_attention_forward.1} parent=47 // pred_check_branch
          %1690 = sbr.rel (%p1688) target = $region56
        $region55: #{double_attention_forward.1} parent=47 // pred_region
          %s1692 = ssub.s32 128, 128
          %1693 = vsyncadd %s1668, %s1692
          %s1694 = smul.addr %s26, 128
          %s1695 = scalar_lea.hbm %s8, %s1694
          %s1697 = sshll.u32 %s1671, 4
          %s1698 = int_to_ptr.vmem [resolvable:$true] %s1697
          %1700 = dma.vmem_to_hbm [thread:$0]  %s1698, 128, %s1695, %s1668
        $region56: #{double_attention_forward.1} parent=47 // pred_fallthru
          _
      $region48: #{double_attention_forward.1} parent=5 // pred_fallthru
        _
      %p1701 = scmp.le.s32.totalorder 2, %s21
      // Predicated region
      $region57: #{double_attention_forward.1} parent=5 // pred_check
        %p1702 = pneg %p1701
      $region58: #{double_attention_forward.1} parent=5 // pred_check_branch
        %1704 = sbr.rel (%p1702) target = $region60
      $region59: #{double_attention_forward.1} parent=5 // pred_region
        %s1705 = ssub.s32 %s21, 2
        // Predicated region
        $region61: #{double_attention_forward.1} parent=59 // pred_check
          %p1706 = pneg %p207
        $region62: #{double_attention_forward.1} parent=59 // pred_check_branch
          %1708 = sbr.rel (%p1706) target = $region64
        $region63: #{double_attention_forward.1} parent=59 // pred_region
          %s1709 = sand.u32 %s192, 1
          %s1710 = scalar_lea.sflag [#allocation4], %s1709
          %s1711 = sand.u32 %s192, 1
          %s1712 = smul.addr %s1711, 16
          %s1713 = scalar_lea.vmem [#allocation3], %s1712
          %1714 = dma.done %s1710, 256
        $region64: #{double_attention_forward.1} parent=59 // pred_fallthru
          _
        // Predicated region
        $region65: #{double_attention_forward.1} parent=59 // pred_check
          %p1715 = pneg %p233
        $region66: #{double_attention_forward.1} parent=59 // pred_check_branch
          %1717 = sbr.rel (%p1715) target = $region68
        $region67: #{double_attention_forward.1} parent=59 // pred_region
          %s1718 = sand.u32 %s218, 1
          %s1719 = scalar_lea.sflag [#allocation6], %s1718
          %s1720 = sand.u32 %s218, 1
          %s1721 = smul.addr %s1720, 8
          %s1722 = scalar_lea.vmem [#allocation5], %s1721
          %1723 = dma.done %s1719, 128
        $region68: #{double_attention_forward.1} parent=59 // pred_fallthru
          _
      $region60: #{double_attention_forward.1} parent=5 // pred_fallthru
        _
    $region6: #{double_attention_forward.1} parent=1 // loop_footer
      %s25 = sadd.s32 1, %s21
    $region7: #{double_attention_forward.1} parent=1 // loop_footer_branch
      %20 = sbr.rel target = $region3
    $region8: #{double_attention_forward.1} parent=1 // loop_exit
      _
    %1724 = vsyncpa [#allocation4], 1
    %s1725 = scalar_lea.sflag [#allocation4], 1
    %1726 = vsyncpa %s1725, 1
    %1727 = vsyncpa [#allocation6], 1
    %s1728 = scalar_lea.sflag [#allocation6], 1
    %1729 = vsyncpa %s1728, 1

</llo_original>
